<compile_context>
chip_gen: v7x
topology: tpu7x:2x2x1
jax: 0.10.0
libtpu: 0.0.40
codegen_flags: <defaults>
</compile_context>

<pallas_src>
import functools

import jax
import jax.numpy as jnp
from jax.experimental import pallas as pl
from jax.experimental.pallas import tpu as pltpu


def _round_up(x, m):
    return -(-x // m) * m


def _mc_dropout_conv_kernel(scale_ref, x_ref, w_ref, b_ref, o_ref, a_ref,
                            *, B, Cin, KH, KW, Wp, Lo_pad):
    """One grid step = B MC-dropout samples, all operands in VMEM.

    scale_ref: (B, Cin, 1)      f32   dropout2d per-(sample, channel) scale
    x_ref:     (B, Cin, L_pad)  f32   zero-padded input, spatial flat (i*Wp + j)
    w_ref:     (Cout, KC)       bf16  conv weights, columns ordered (kh, kw, cin)
    b_ref:     (Cout, 1)        f32   bias
    o_ref:     (Cout, B*Lo_pad) f32   output, columns = (sample, i*Wp + j)
    a_ref:     (KC, B*Lo_pad)   f32   VMEM scratch: in-kernel im2col buffer
    """
    # dropout2d folded into the activations (per sample, so the single weight
    # LHS below is shared across all B samples in the lane dimension).
    xs = x_ref[...] * scale_ref[...]                        # (B, Cin, L_pad)

    # In-kernel im2col ("overlapping-window" form): the row (kh, kw, cin) of
    # the patch matrix is just the flat input shifted by kh*Wp + kw, so every
    # tap is one contiguous static lane slice — no reshape/transpose needed.
    for b in range(B):
        for t in range(KH * KW):
            kh, kw = divmod(t, KW)
            off = kh * Wp + kw
            a_ref[t * Cin:(t + 1) * Cin, b * Lo_pad:(b + 1) * Lo_pad] = (
                xs[b, :, off:off + Lo_pad])

    # One fused GEMM over all taps, channels and fused samples:
    #   (Cout, KC) x (KC, B*Lo_pad) -> (Cout, B*Lo_pad); bf16 MXU, f32 acc.
    acc = jax.lax.dot_general(
        w_ref[...], a_ref[...].astype(jnp.bfloat16),
        dimension_numbers=(((1,), (0,)), ((), ())),
        preferred_element_type=jnp.float32)

    o_ref[...] = (acc + b_ref[...]).astype(o_ref.dtype)


def mc_dropout_conv(x_nchw, weight, bias, keep_mask, p, padding=1,
                    samples_per_step=4):
    """x_nchw: (N, Cin, H, W); weight: (Cout, Cin, KH, KW); bias: (Cout,);
    keep_mask: (N, Cin) bool Bernoulli(1-p) draws (dropout2d channel mask)."""
    if not 0.0 <= p < 1.0:
        raise ValueError("dropout probability p must be in [0, 1)")
    N, C, H, W = x_nchw.shape
    Cout, Cin, KH, KW = weight.shape
    assert Cin == C
    KC = KH * KW * Cin

    Hp, Wp = H + 2 * padding, W + 2 * padding
    Ho, Wo = Hp - KH + 1, Wp - KW + 1

    # Lane-dense sizes, robust for any H/W (item 5):
    Lo_pad = _round_up(Ho * Wp, 128)                              # GEMM cols / sample
    L_pad = _round_up((KH - 1) * Wp + (KW - 1) + Lo_pad, 128)     # flat input length

    # MC-sample blocking (item 1).
    B = max(1, min(samples_per_step, N))
    NB = pl.cdiv(N, B)
    N_pad = NB * B

    # ---- JAX-side layout glue: zero-pad + flatten only (NO im2col in HBM) ----
    xp = jnp.pad(x_nchw, ((0, N_pad - N), (0, 0),
                          (padding, padding), (padding, padding)))
    xflat = xp.reshape(N_pad, Cin, Hp * Wp)
    xflat = jnp.pad(xflat, ((0, 0), (0, 0), (0, L_pad - Hp * Wp)))

    # dropout2d per-(sample, channel) scale: 0 or 1/(1-p).
    scale = keep_mask.astype(jnp.float32) / (1.0 - p)                # (N, Cin)
    scale = jnp.pad(scale, ((0, N_pad - N), (0, 0)))[:, :, None]     # (N_pad, Cin, 1)

    # Weights as (Cout, KC), columns ordered (kh, kw, cin); bf16 MXU operands.
    w = jnp.transpose(weight, (0, 2, 3, 1)).reshape(Cout, KC).astype(jnp.bfloat16)
    b = bias.reshape(Cout, 1).astype(jnp.float32)

    kernel = functools.partial(
        _mc_dropout_conv_kernel,
        B=B, Cin=Cin, KH=KH, KW=KW, Wp=Wp, Lo_pad=Lo_pad)

    out = pl.pallas_call(
        kernel,
        out_shape=jax.ShapeDtypeStruct((Cout, N_pad * Lo_pad), x_nchw.dtype),
        grid_spec=pltpu.PrefetchScalarGridSpec(
            num_scalar_prefetch=0,
            grid=(NB,),
            in_specs=[
                pl.BlockSpec((B, Cin, 1), lambda i: (i, 0, 0)),      # dropout scale
                pl.BlockSpec((B, Cin, L_pad), lambda i: (i, 0, 0)),  # padded input
                pl.BlockSpec((Cout, KC), lambda i: (0, 0)),          # weights (grid-invariant)
                pl.BlockSpec((Cout, 1), lambda i: (0, 0)),           # bias (grid-invariant)
            ],
            out_specs=pl.BlockSpec((Cout, B * Lo_pad), lambda i: (0, i)),
            scratch_shapes=[pltpu.VMEM((KC, B * Lo_pad), jnp.float32)],
        ),
        compiler_params=pltpu.CompilerParams(
            dimension_semantics=("parallel",)),      # v7x: 2 TCs split MC samples
    )(scale, xflat, w, b)

    # (Cout, N_pad*Lo_pad) -> NCHW: drop padded samples and the garbage columns
    # (j >= Wo / lane padding) of the overlapping-window layout, then transpose.
    out = out.reshape(Cout, N_pad, Lo_pad)[:, :N, :Ho * Wp]
    out = out.reshape(Cout, N, Ho, Wp)[:, :, :, :Wo]
    return jnp.transpose(out, (1, 0, 2, 3))


def _reference(x_nchw, weight, bias, keep_mask, p, padding=1):
    """Pure-JAX reference: dropout2d + conv2d (same channel mask)."""
    scale = (keep_mask.astype(x_nchw.dtype) / (1.0 - p))[:, :, None, None]
    xd = x_nchw * scale
    y = jax.lax.conv_general_dilated(
        xd, weight, window_strides=(1, 1),
        padding=[(padding, padding), (padding, padding)],
        dimension_numbers=("NCHW", "OIHW", "NCHW"))
    return y + bias[None, :, None, None]


if __name__ == "__main__":
    key = jax.random.PRNGKey(0)
    k1, k2, k3, k4 = jax.random.split(key, 4)

    # Module instantiation choice: MCDropoutConv(Conv2d(4, 8, 3, padding=1)),
    # p = 0.2, with 8 MC-dropout samples fused 4-per-grid-step.
    N, Cin, H, W = 8, 4, 16, 16
    Cout, K = 8, 3
    p = 0.2

    x = jax.random.normal(k1, (N, Cin, H, W), jnp.float32)
    weight = jax.random.normal(k2, (Cout, Cin, K, K), jnp.float32) * 0.1
    bias = jax.random.normal(k3, (Cout,), jnp.float32) * 0.1
    # TODO(synk): dropout mask uses JAX RNG (same Bernoulli(1-p) distribution
    # as torch's dropout2d, not bit-identical draws).
    keep_mask = jax.random.bernoulli(k4, 1.0 - p, (N, Cin))

    y = mc_dropout_conv(x, weight, bias, keep_mask, p, padding=1,
                        samples_per_step=4)
    y = jax.block_until_ready(y)

    assert y.shape == (N, Cout, H, W), y.shape
    y_ref = _reference(x, weight, bias, keep_mask, p, padding=1)
    # bf16 MXU operands with f32 accumulation -> tolerance loosened vs pure f32.
    assert jnp.allclose(y, y_ref, atol=2e-2, rtol=2e-2), \
        float(jnp.max(jnp.abs(y - y_ref)))

    print("KERNEL_OK")
</pallas_src>

<mosaic_0001>
module attributes {stable_mosaic.version = 11 : i64} {
  func.func @_mc_dropout_conv_kernel(%arg0: i32, %arg1: memref<4x4x1xf32, #tpu.memory_space<vmem>>, %arg2: memref<4x4x512xf32, #tpu.memory_space<vmem>>, %arg3: memref<8x36xbf16, #tpu.memory_space<vmem>>, %arg4: memref<8x1xf32, #tpu.memory_space<vmem>>, %arg5: memref<8x1536xf32, #tpu.memory_space<vmem>>, %arg6: memref<36x1536xf32, #tpu.memory_space<vmem>>) attributes {dimension_semantics = [#tpu.dimension_semantics<parallel>], iteration_bounds = array<i64: 2>, scalar_prefetch = 0 : i64, scratch_operands = 1 : i64, tpu.core_type = #tpu.core_type<tc>, window_params = [{transform_indices = @transform_0, window_bounds = array<i64: 4, 4, 1>}, {transform_indices = @transform_1, window_bounds = array<i64: 4, 4, 512>}, {pipeline_mode = #tpu.pipeline_mode<synchronous>, transform_indices = @transform_2, window_bounds = array<i64: 8, 36>}, {pipeline_mode = #tpu.pipeline_mode<synchronous>, transform_indices = @transform_3, window_bounds = array<i64: 8, 1>}, {transform_indices = @transform_4, window_bounds = array<i64: 8, 1536>}]} {
    %c0 = arith.constant 0 : index
    %c0_0 = arith.constant 0 : index
    %c0_1 = arith.constant 0 : index
    %0 = vector.load %arg2[%c0, %c0_0, %c0_1] : memref<4x4x512xf32, #tpu.memory_space<vmem>>, vector<4x4x512xf32>
    %c0_2 = arith.constant 0 : index
    %c0_3 = arith.constant 0 : index
    %c0_4 = arith.constant 0 : index
    %1 = vector.load %arg1[%c0_2, %c0_3, %c0_4] : memref<4x4x1xf32, #tpu.memory_space<vmem>>, vector<4x4x1xf32>
    %2 = vector.broadcast %1 : vector<4x4x1xf32> to vector<4x4x512xf32>
    %3 = arith.mulf %0, %2 : vector<4x4x512xf32>
    %4 = vector.extract_strided_slice %3 {offsets = [0, 0, 0], sizes = [1, 4, 384], strides = [1, 1, 1]} : vector<4x4x512xf32> to vector<1x4x384xf32>
    %5 = vector.shape_cast %4 : vector<1x4x384xf32> to vector<4x384xf32>
    %c0_5 = arith.constant 0 : index
    %c0_6 = arith.constant 0 : index
    %6 = vector.load %arg6[%c0_5, %c0_6] : memref<36x1536xf32, #tpu.memory_space<vmem>>, vector<4x384xf32>
    tpu.vector_store %arg6[%c0_5, %c0_6], %5 {strides = array<i32>} : memref<36x1536xf32, #tpu.memory_space<vmem>>, vector<4x384xf32>,
    %7 = vector.extract_strided_slice %3 {offsets = [0, 0, 1], sizes = [1, 4, 384], strides = [1, 1, 1]} : vector<4x4x512xf32> to vector<1x4x384xf32>
    %8 = vector.shape_cast %7 : vector<1x4x384xf32> to vector<4x384xf32>
    %c4 = arith.constant 4 : index
    %c0_7 = arith.constant 0 : index
    %9 = vector.load %arg6[%c4, %c0_7] : memref<36x1536xf32, #tpu.memory_space<vmem>>, vector<4x384xf32>
    tpu.vector_store %arg6[%c4, %c0_7], %8 {strides = array<i32>} : memref<36x1536xf32, #tpu.memory_space<vmem>>, vector<4x384xf32>,
    %10 = vector.extract_strided_slice %3 {offsets = [0, 0, 2], sizes = [1, 4, 384], strides = [1, 1, 1]} : vector<4x4x512xf32> to vector<1x4x384xf32>
    %11 = vector.shape_cast %10 : vector<1x4x384xf32> to vector<4x384xf32>
    %c8 = arith.constant 8 : index
    %c0_8 = arith.constant 0 : index
    %12 = vector.load %arg6[%c8, %c0_8] : memref<36x1536xf32, #tpu.memory_space<vmem>>, vector<4x384xf32>
    tpu.vector_store %arg6[%c8, %c0_8], %11 {strides = array<i32>} : memref<36x1536xf32, #tpu.memory_space<vmem>>, vector<4x384xf32>,
    %13 = vector.extract_strided_slice %3 {offsets = [0, 0, 18], sizes = [1, 4, 384], strides = [1, 1, 1]} : vector<4x4x512xf32> to vector<1x4x384xf32>
    %14 = vector.shape_cast %13 : vector<1x4x384xf32> to vector<4x384xf32>
    %c12 = arith.constant 12 : index
    %c0_9 = arith.constant 0 : index
    %15 = vector.load %arg6[%c12, %c0_9] : memref<36x1536xf32, #tpu.memory_space<vmem>>, vector<4x384xf32>
    tpu.vector_store %arg6[%c12, %c0_9], %14 {strides = array<i32>} : memref<36x1536xf32, #tpu.memory_space<vmem>>, vector<4x384xf32>,
    %16 = vector.extract_strided_slice %3 {offsets = [0, 0, 19], sizes = [1, 4, 384], strides = [1, 1, 1]} : vector<4x4x512xf32> to vector<1x4x384xf32>
    %17 = vector.shape_cast %16 : vector<1x4x384xf32> to vector<4x384xf32>
    %c16 = arith.constant 16 : index
    %c0_10 = arith.constant 0 : index
    %18 = vector.load %arg6[%c16, %c0_10] : memref<36x1536xf32, #tpu.memory_space<vmem>>, vector<4x384xf32>
    tpu.vector_store %arg6[%c16, %c0_10], %17 {strides = array<i32>} : memref<36x1536xf32, #tpu.memory_space<vmem>>, vector<4x384xf32>,
    %19 = vector.extract_strided_slice %3 {offsets = [0, 0, 20], sizes = [1, 4, 384], strides = [1, 1, 1]} : vector<4x4x512xf32> to vector<1x4x384xf32>
    %20 = vector.shape_cast %19 : vector<1x4x384xf32> to vector<4x384xf32>
    %c20 = arith.constant 20 : index
    %c0_11 = arith.constant 0 : index
    %21 = vector.load %arg6[%c20, %c0_11] : memref<36x1536xf32, #tpu.memory_space<vmem>>, vector<4x384xf32>
    tpu.vector_store %arg6[%c20, %c0_11], %20 {strides = array<i32>} : memref<36x1536xf32, #tpu.memory_space<vmem>>, vector<4x384xf32>,
    %22 = vector.extract_strided_slice %3 {offsets = [0, 0, 36], sizes = [1, 4, 384], strides = [1, 1, 1]} : vector<4x4x512xf32> to vector<1x4x384xf32>
    %23 = vector.shape_cast %22 : vector<1x4x384xf32> to vector<4x384xf32>
    %c24 = arith.constant 24 : index
    %c0_12 = arith.constant 0 : index
    %24 = vector.load %arg6[%c24, %c0_12] : memref<36x1536xf32, #tpu.memory_space<vmem>>, vector<4x384xf32>
    tpu.vector_store %arg6[%c24, %c0_12], %23 {strides = array<i32>} : memref<36x1536xf32, #tpu.memory_space<vmem>>, vector<4x384xf32>,
    %25 = vector.extract_strided_slice %3 {offsets = [0, 0, 37], sizes = [1, 4, 384], strides = [1, 1, 1]} : vector<4x4x512xf32> to vector<1x4x384xf32>
    %26 = vector.shape_cast %25 : vector<1x4x384xf32> to vector<4x384xf32>
    %c28 = arith.constant 28 : index
    %c0_13 = arith.constant 0 : index
    %27 = vector.load %arg6[%c28, %c0_13] : memref<36x1536xf32, #tpu.memory_space<vmem>>, vector<4x384xf32>
    tpu.vector_store %arg6[%c28, %c0_13], %26 {strides = array<i32>} : memref<36x1536xf32, #tpu.memory_space<vmem>>, vector<4x384xf32>,
    %28 = vector.extract_strided_slice %3 {offsets = [0, 0, 38], sizes = [1, 4, 384], strides = [1, 1, 1]} : vector<4x4x512xf32> to vector<1x4x384xf32>
    %29 = vector.shape_cast %28 : vector<1x4x384xf32> to vector<4x384xf32>
    %c32 = arith.constant 32 : index
    %c0_14 = arith.constant 0 : index
    %30 = vector.load %arg6[%c32, %c0_14] : memref<36x1536xf32, #tpu.memory_space<vmem>>, vector<4x384xf32>
    tpu.vector_store %arg6[%c32, %c0_14], %29 {strides = array<i32>} : memref<36x1536xf32, #tpu.memory_space<vmem>>, vector<4x384xf32>,
    %31 = vector.extract_strided_slice %3 {offsets = [1, 0, 0], sizes = [1, 4, 384], strides = [1, 1, 1]} : vector<4x4x512xf32> to vector<1x4x384xf32>
    %32 = vector.shape_cast %31 : vector<1x4x384xf32> to vector<4x384xf32>
    %c0_15 = arith.constant 0 : index
    %c384 = arith.constant 384 : index
    %33 = vector.load %arg6[%c0_15, %c384] : memref<36x1536xf32, #tpu.memory_space<vmem>>, vector<4x384xf32>
    tpu.vector_store %arg6[%c0_15, %c384], %32 {strides = array<i32>} : memref<36x1536xf32, #tpu.memory_space<vmem>>, vector<4x384xf32>,
    %34 = vector.extract_strided_slice %3 {offsets = [1, 0, 1], sizes = [1, 4, 384], strides = [1, 1, 1]} : vector<4x4x512xf32> to vector<1x4x384xf32>
    %35 = vector.shape_cast %34 : vector<1x4x384xf32> to vector<4x384xf32>
    %c4_16 = arith.constant 4 : index
    %c384_17 = arith.constant 384 : index
    %36 = vector.load %arg6[%c4_16, %c384_17] : memref<36x1536xf32, #tpu.memory_space<vmem>>, vector<4x384xf32>
    tpu.vector_store %arg6[%c4_16, %c384_17], %35 {strides = array<i32>} : memref<36x1536xf32, #tpu.memory_space<vmem>>, vector<4x384xf32>,
    %37 = vector.extract_strided_slice %3 {offsets = [1, 0, 2], sizes = [1, 4, 384], strides = [1, 1, 1]} : vector<4x4x512xf32> to vector<1x4x384xf32>
    %38 = vector.shape_cast %37 : vector<1x4x384xf32> to vector<4x384xf32>
    %c8_18 = arith.constant 8 : index
    %c384_19 = arith.constant 384 : index
    %39 = vector.load %arg6[%c8_18, %c384_19] : memref<36x1536xf32, #tpu.memory_space<vmem>>, vector<4x384xf32>
    tpu.vector_store %arg6[%c8_18, %c384_19], %38 {strides = array<i32>} : memref<36x1536xf32, #tpu.memory_space<vmem>>, vector<4x384xf32>,
    %40 = vector.extract_strided_slice %3 {offsets = [1, 0, 18], sizes = [1, 4, 384], strides = [1, 1, 1]} : vector<4x4x512xf32> to vector<1x4x384xf32>
    %41 = vector.shape_cast %40 : vector<1x4x384xf32> to vector<4x384xf32>
    %c12_20 = arith.constant 12 : index
    %c384_21 = arith.constant 384 : index
    %42 = vector.load %arg6[%c12_20, %c384_21] : memref<36x1536xf32, #tpu.memory_space<vmem>>, vector<4x384xf32>
    tpu.vector_store %arg6[%c12_20, %c384_21], %41 {strides = array<i32>} : memref<36x1536xf32, #tpu.memory_space<vmem>>, vector<4x384xf32>,
    %43 = vector.extract_strided_slice %3 {offsets = [1, 0, 19], sizes = [1, 4, 384], strides = [1, 1, 1]} : vector<4x4x512xf32> to vector<1x4x384xf32>
    %44 = vector.shape_cast %43 : vector<1x4x384xf32> to vector<4x384xf32>
    %c16_22 = arith.constant 16 : index
    %c384_23 = arith.constant 384 : index
    %45 = vector.load %arg6[%c16_22, %c384_23] : memref<36x1536xf32, #tpu.memory_space<vmem>>, vector<4x384xf32>
    tpu.vector_store %arg6[%c16_22, %c384_23], %44 {strides = array<i32>} : memref<36x1536xf32, #tpu.memory_space<vmem>>, vector<4x384xf32>,
    %46 = vector.extract_strided_slice %3 {offsets = [1, 0, 20], sizes = [1, 4, 384], strides = [1, 1, 1]} : vector<4x4x512xf32> to vector<1x4x384xf32>
    %47 = vector.shape_cast %46 : vector<1x4x384xf32> to vector<4x384xf32>
    %c20_24 = arith.constant 20 : index
    %c384_25 = arith.constant 384 : index
    %48 = vector.load %arg6[%c20_24, %c384_25] : memref<36x1536xf32, #tpu.memory_space<vmem>>, vector<4x384xf32>
    tpu.vector_store %arg6[%c20_24, %c384_25], %47 {strides = array<i32>} : memref<36x1536xf32, #tpu.memory_space<vmem>>, vector<4x384xf32>,
    %49 = vector.extract_strided_slice %3 {offsets = [1, 0, 36], sizes = [1, 4, 384], strides = [1, 1, 1]} : vector<4x4x512xf32> to vector<1x4x384xf32>
    %50 = vector.shape_cast %49 : vector<1x4x384xf32> to vector<4x384xf32>
    %c24_26 = arith.constant 24 : index
    %c384_27 = arith.constant 384 : index
    %51 = vector.load %arg6[%c24_26, %c384_27] : memref<36x1536xf32, #tpu.memory_space<vmem>>, vector<4x384xf32>
    tpu.vector_store %arg6[%c24_26, %c384_27], %50 {strides = array<i32>} : memref<36x1536xf32, #tpu.memory_space<vmem>>, vector<4x384xf32>,
    %52 = vector.extract_strided_slice %3 {offsets = [1, 0, 37], sizes = [1, 4, 384], strides = [1, 1, 1]} : vector<4x4x512xf32> to vector<1x4x384xf32>
    %53 = vector.shape_cast %52 : vector<1x4x384xf32> to vector<4x384xf32>
    %c28_28 = arith.constant 28 : index
    %c384_29 = arith.constant 384 : index
    %54 = vector.load %arg6[%c28_28, %c384_29] : memref<36x1536xf32, #tpu.memory_space<vmem>>, vector<4x384xf32>
    tpu.vector_store %arg6[%c28_28, %c384_29], %53 {strides = array<i32>} : memref<36x1536xf32, #tpu.memory_space<vmem>>, vector<4x384xf32>,
    %55 = vector.extract_strided_slice %3 {offsets = [1, 0, 38], sizes = [1, 4, 384], strides = [1, 1, 1]} : vector<4x4x512xf32> to vector<1x4x384xf32>
    %56 = vector.shape_cast %55 : vector<1x4x384xf32> to vector<4x384xf32>
    %c32_30 = arith.constant 32 : index
    %c384_31 = arith.constant 384 : index
    %57 = vector.load %arg6[%c32_30, %c384_31] : memref<36x1536xf32, #tpu.memory_space<vmem>>, vector<4x384xf32>
    tpu.vector_store %arg6[%c32_30, %c384_31], %56 {strides = array<i32>} : memref<36x1536xf32, #tpu.memory_space<vmem>>, vector<4x384xf32>,
    %58 = vector.extract_strided_slice %3 {offsets = [2, 0, 0], sizes = [1, 4, 384], strides = [1, 1, 1]} : vector<4x4x512xf32> to vector<1x4x384xf32>
    %59 = vector.shape_cast %58 : vector<1x4x384xf32> to vector<4x384xf32>
    %c0_32 = arith.constant 0 : index
    %c768 = arith.constant 768 : index
    %60 = vector.load %arg6[%c0_32, %c768] : memref<36x1536xf32, #tpu.memory_space<vmem>>, vector<4x384xf32>
    tpu.vector_store %arg6[%c0_32, %c768], %59 {strides = array<i32>} : memref<36x1536xf32, #tpu.memory_space<vmem>>, vector<4x384xf32>,
    %61 = vector.extract_strided_slice %3 {offsets = [2, 0, 1], sizes = [1, 4, 384], strides = [1, 1, 1]} : vector<4x4x512xf32> to vector<1x4x384xf32>
    %62 = vector.shape_cast %61 : vector<1x4x384xf32> to vector<4x384xf32>
    %c4_33 = arith.constant 4 : index
    %c768_34 = arith.constant 768 : index
    %63 = vector.load %arg6[%c4_33, %c768_34] : memref<36x1536xf32, #tpu.memory_space<vmem>>, vector<4x384xf32>
    tpu.vector_store %arg6[%c4_33, %c768_34], %62 {strides = array<i32>} : memref<36x1536xf32, #tpu.memory_space<vmem>>, vector<4x384xf32>,
    %64 = vector.extract_strided_slice %3 {offsets = [2, 0, 2], sizes = [1, 4, 384], strides = [1, 1, 1]} : vector<4x4x512xf32> to vector<1x4x384xf32>
    %65 = vector.shape_cast %64 : vector<1x4x384xf32> to vector<4x384xf32>
    %c8_35 = arith.constant 8 : index
    %c768_36 = arith.constant 768 : index
    %66 = vector.load %arg6[%c8_35, %c768_36] : memref<36x1536xf32, #tpu.memory_space<vmem>>, vector<4x384xf32>
    tpu.vector_store %arg6[%c8_35, %c768_36], %65 {strides = array<i32>} : memref<36x1536xf32, #tpu.memory_space<vmem>>, vector<4x384xf32>,
    %67 = vector.extract_strided_slice %3 {offsets = [2, 0, 18], sizes = [1, 4, 384], strides = [1, 1, 1]} : vector<4x4x512xf32> to vector<1x4x384xf32>
    %68 = vector.shape_cast %67 : vector<1x4x384xf32> to vector<4x384xf32>
    %c12_37 = arith.constant 12 : index
    %c768_38 = arith.constant 768 : index
    %69 = vector.load %arg6[%c12_37, %c768_38] : memref<36x1536xf32, #tpu.memory_space<vmem>>, vector<4x384xf32>
    tpu.vector_store %arg6[%c12_37, %c768_38], %68 {strides = array<i32>} : memref<36x1536xf32, #tpu.memory_space<vmem>>, vector<4x384xf32>,
    %70 = vector.extract_strided_slice %3 {offsets = [2, 0, 19], sizes = [1, 4, 384], strides = [1, 1, 1]} : vector<4x4x512xf32> to vector<1x4x384xf32>
    %71 = vector.shape_cast %70 : vector<1x4x384xf32> to vector<4x384xf32>
    %c16_39 = arith.constant 16 : index
    %c768_40 = arith.constant 768 : index
    %72 = vector.load %arg6[%c16_39, %c768_40] : memref<36x1536xf32, #tpu.memory_space<vmem>>, vector<4x384xf32>
    tpu.vector_store %arg6[%c16_39, %c768_40], %71 {strides = array<i32>} : memref<36x1536xf32, #tpu.memory_space<vmem>>, vector<4x384xf32>,
    %73 = vector.extract_strided_slice %3 {offsets = [2, 0, 20], sizes = [1, 4, 384], strides = [1, 1, 1]} : vector<4x4x512xf32> to vector<1x4x384xf32>
    %74 = vector.shape_cast %73 : vector<1x4x384xf32> to vector<4x384xf32>
    %c20_41 = arith.constant 20 : index
    %c768_42 = arith.constant 768 : index
    %75 = vector.load %arg6[%c20_41, %c768_42] : memref<36x1536xf32, #tpu.memory_space<vmem>>, vector<4x384xf32>
    tpu.vector_store %arg6[%c20_41, %c768_42], %74 {strides = array<i32>} : memref<36x1536xf32, #tpu.memory_space<vmem>>, vector<4x384xf32>,
    %76 = vector.extract_strided_slice %3 {offsets = [2, 0, 36], sizes = [1, 4, 384], strides = [1, 1, 1]} : vector<4x4x512xf32> to vector<1x4x384xf32>
    %77 = vector.shape_cast %76 : vector<1x4x384xf32> to vector<4x384xf32>
    %c24_43 = arith.constant 24 : index
    %c768_44 = arith.constant 768 : index
    %78 = vector.load %arg6[%c24_43, %c768_44] : memref<36x1536xf32, #tpu.memory_space<vmem>>, vector<4x384xf32>
    tpu.vector_store %arg6[%c24_43, %c768_44], %77 {strides = array<i32>} : memref<36x1536xf32, #tpu.memory_space<vmem>>, vector<4x384xf32>,
    %79 = vector.extract_strided_slice %3 {offsets = [2, 0, 37], sizes = [1, 4, 384], strides = [1, 1, 1]} : vector<4x4x512xf32> to vector<1x4x384xf32>
    %80 = vector.shape_cast %79 : vector<1x4x384xf32> to vector<4x384xf32>
    %c28_45 = arith.constant 28 : index
    %c768_46 = arith.constant 768 : index
    %81 = vector.load %arg6[%c28_45, %c768_46] : memref<36x1536xf32, #tpu.memory_space<vmem>>, vector<4x384xf32>
    tpu.vector_store %arg6[%c28_45, %c768_46], %80 {strides = array<i32>} : memref<36x1536xf32, #tpu.memory_space<vmem>>, vector<4x384xf32>,
    %82 = vector.extract_strided_slice %3 {offsets = [2, 0, 38], sizes = [1, 4, 384], strides = [1, 1, 1]} : vector<4x4x512xf32> to vector<1x4x384xf32>
    %83 = vector.shape_cast %82 : vector<1x4x384xf32> to vector<4x384xf32>
    %c32_47 = arith.constant 32 : index
    %c768_48 = arith.constant 768 : index
    %84 = vector.load %arg6[%c32_47, %c768_48] : memref<36x1536xf32, #tpu.memory_space<vmem>>, vector<4x384xf32>
    tpu.vector_store %arg6[%c32_47, %c768_48], %83 {strides = array<i32>} : memref<36x1536xf32, #tpu.memory_space<vmem>>, vector<4x384xf32>,
    %85 = vector.extract_strided_slice %3 {offsets = [3, 0, 0], sizes = [1, 4, 384], strides = [1, 1, 1]} : vector<4x4x512xf32> to vector<1x4x384xf32>
    %86 = vector.shape_cast %85 : vector<1x4x384xf32> to vector<4x384xf32>
    %c0_49 = arith.constant 0 : index
    %c1152 = arith.constant 1152 : index
    %87 = vector.load %arg6[%c0_49, %c1152] : memref<36x1536xf32, #tpu.memory_space<vmem>>, vector<4x384xf32>
    tpu.vector_store %arg6[%c0_49, %c1152], %86 {strides = array<i32>} : memref<36x1536xf32, #tpu.memory_space<vmem>>, vector<4x384xf32>,
    %88 = vector.extract_strided_slice %3 {offsets = [3, 0, 1], sizes = [1, 4, 384], strides = [1, 1, 1]} : vector<4x4x512xf32> to vector<1x4x384xf32>
    %89 = vector.shape_cast %88 : vector<1x4x384xf32> to vector<4x384xf32>
    %c4_50 = arith.constant 4 : index
    %c1152_51 = arith.constant 1152 : index
    %90 = vector.load %arg6[%c4_50, %c1152_51] : memref<36x1536xf32, #tpu.memory_space<vmem>>, vector<4x384xf32>
    tpu.vector_store %arg6[%c4_50, %c1152_51], %89 {strides = array<i32>} : memref<36x1536xf32, #tpu.memory_space<vmem>>, vector<4x384xf32>,
    %91 = vector.extract_strided_slice %3 {offsets = [3, 0, 2], sizes = [1, 4, 384], strides = [1, 1, 1]} : vector<4x4x512xf32> to vector<1x4x384xf32>
    %92 = vector.shape_cast %91 : vector<1x4x384xf32> to vector<4x384xf32>
    %c8_52 = arith.constant 8 : index
    %c1152_53 = arith.constant 1152 : index
    %93 = vector.load %arg6[%c8_52, %c1152_53] : memref<36x1536xf32, #tpu.memory_space<vmem>>, vector<4x384xf32>
    tpu.vector_store %arg6[%c8_52, %c1152_53], %92 {strides = array<i32>} : memref<36x1536xf32, #tpu.memory_space<vmem>>, vector<4x384xf32>,
    %94 = vector.extract_strided_slice %3 {offsets = [3, 0, 18], sizes = [1, 4, 384], strides = [1, 1, 1]} : vector<4x4x512xf32> to vector<1x4x384xf32>
    %95 = vector.shape_cast %94 : vector<1x4x384xf32> to vector<4x384xf32>
    %c12_54 = arith.constant 12 : index
    %c1152_55 = arith.constant 1152 : index
    %96 = vector.load %arg6[%c12_54, %c1152_55] : memref<36x1536xf32, #tpu.memory_space<vmem>>, vector<4x384xf32>
    tpu.vector_store %arg6[%c12_54, %c1152_55], %95 {strides = array<i32>} : memref<36x1536xf32, #tpu.memory_space<vmem>>, vector<4x384xf32>,
    %97 = vector.extract_strided_slice %3 {offsets = [3, 0, 19], sizes = [1, 4, 384], strides = [1, 1, 1]} : vector<4x4x512xf32> to vector<1x4x384xf32>
    %98 = vector.shape_cast %97 : vector<1x4x384xf32> to vector<4x384xf32>
    %c16_56 = arith.constant 16 : index
    %c1152_57 = arith.constant 1152 : index
    %99 = vector.load %arg6[%c16_56, %c1152_57] : memref<36x1536xf32, #tpu.memory_space<vmem>>, vector<4x384xf32>
    tpu.vector_store %arg6[%c16_56, %c1152_57], %98 {strides = array<i32>} : memref<36x1536xf32, #tpu.memory_space<vmem>>, vector<4x384xf32>,
    %100 = vector.extract_strided_slice %3 {offsets = [3, 0, 20], sizes = [1, 4, 384], strides = [1, 1, 1]} : vector<4x4x512xf32> to vector<1x4x384xf32>
    %101 = vector.shape_cast %100 : vector<1x4x384xf32> to vector<4x384xf32>
    %c20_58 = arith.constant 20 : index
    %c1152_59 = arith.constant 1152 : index
    %102 = vector.load %arg6[%c20_58, %c1152_59] : memref<36x1536xf32, #tpu.memory_space<vmem>>, vector<4x384xf32>
    tpu.vector_store %arg6[%c20_58, %c1152_59], %101 {strides = array<i32>} : memref<36x1536xf32, #tpu.memory_space<vmem>>, vector<4x384xf32>,
    %103 = vector.extract_strided_slice %3 {offsets = [3, 0, 36], sizes = [1, 4, 384], strides = [1, 1, 1]} : vector<4x4x512xf32> to vector<1x4x384xf32>
    %104 = vector.shape_cast %103 : vector<1x4x384xf32> to vector<4x384xf32>
    %c24_60 = arith.constant 24 : index
    %c1152_61 = arith.constant 1152 : index
    %105 = vector.load %arg6[%c24_60, %c1152_61] : memref<36x1536xf32, #tpu.memory_space<vmem>>, vector<4x384xf32>
    tpu.vector_store %arg6[%c24_60, %c1152_61], %104 {strides = array<i32>} : memref<36x1536xf32, #tpu.memory_space<vmem>>, vector<4x384xf32>,
    %106 = vector.extract_strided_slice %3 {offsets = [3, 0, 37], sizes = [1, 4, 384], strides = [1, 1, 1]} : vector<4x4x512xf32> to vector<1x4x384xf32>
    %107 = vector.shape_cast %106 : vector<1x4x384xf32> to vector<4x384xf32>
    %c28_62 = arith.constant 28 : index
    %c1152_63 = arith.constant 1152 : index
    %108 = vector.load %arg6[%c28_62, %c1152_63] : memref<36x1536xf32, #tpu.memory_space<vmem>>, vector<4x384xf32>
    tpu.vector_store %arg6[%c28_62, %c1152_63], %107 {strides = array<i32>} : memref<36x1536xf32, #tpu.memory_space<vmem>>, vector<4x384xf32>,
    %109 = vector.extract_strided_slice %3 {offsets = [3, 0, 38], sizes = [1, 4, 384], strides = [1, 1, 1]} : vector<4x4x512xf32> to vector<1x4x384xf32>
    %110 = vector.shape_cast %109 : vector<1x4x384xf32> to vector<4x384xf32>
    %c32_64 = arith.constant 32 : index
    %c1152_65 = arith.constant 1152 : index
    %111 = vector.load %arg6[%c32_64, %c1152_65] : memref<36x1536xf32, #tpu.memory_space<vmem>>, vector<4x384xf32>
    tpu.vector_store %arg6[%c32_64, %c1152_65], %110 {strides = array<i32>} : memref<36x1536xf32, #tpu.memory_space<vmem>>, vector<4x384xf32>,
    %c0_66 = arith.constant 0 : index
    %c0_67 = arith.constant 0 : index
    %112 = vector.load %arg3[%c0_66, %c0_67] : memref<8x36xbf16, #tpu.memory_space<vmem>>, vector<8x36xbf16>
    %c0_68 = arith.constant 0 : index
    %c0_69 = arith.constant 0 : index
    %113 = vector.load %arg6[%c0_68, %c0_69] : memref<36x1536xf32, #tpu.memory_space<vmem>>, vector<36x1536xf32>
    %114 = arith.truncf %113 : vector<36x1536xf32> to vector<36x1536xbf16>
    %cst = arith.constant dense<0.000000e+00> : vector<8x1536xf32>
    %115 = tpu.matmul %112, %114, %cst {dimension_numbers = #tpu.dot_dimension_numbers<[1], [0], [0], [1], [0, 0, 1, 1], [], []>} : vector<8x36xbf16>, vector<36x1536xbf16>, vector<8x1536xf32> -> vector<8x1536xf32>
    %c0_70 = arith.constant 0 : index
    %c0_71 = arith.constant 0 : index
    %116 = vector.load %arg4[%c0_70, %c0_71] : memref<8x1xf32, #tpu.memory_space<vmem>>, vector<8x1xf32>
    %117 = vector.broadcast %116 : vector<8x1xf32> to vector<8x1536xf32>
    %118 = arith.addf %115, %117 : vector<8x1536xf32>
    %c0_72 = arith.constant 0 : index
    %c0_73 = arith.constant 0 : index
    %119 = vector.load %arg5[%c0_72, %c0_73] : memref<8x1536xf32, #tpu.memory_space<vmem>>, vector<8x1536xf32>
    tpu.vector_store %arg5[%c0_72, %c0_73], %118 {strides = array<i32>} : memref<8x1536xf32, #tpu.memory_space<vmem>>, vector<8x1536xf32>,
    return
  }
  func.func @transform_0(%arg0: i32) -> (i32, i32, i32) {
    %c0_i32 = arith.constant 0 : i32
    %c0_i32_0 = arith.constant 0 : i32
    %c0_i32_1 = arith.constant 0 : i32
    return %arg0, %c0_i32, %c0_i32_0 : i32, i32, i32
  }
  func.func @transform_1(%arg0: i32) -> (i32, i32, i32) {
    %c0_i32 = arith.constant 0 : i32
    %c0_i32_0 = arith.constant 0 : i32
    %c0_i32_1 = arith.constant 0 : i32
    return %arg0, %c0_i32, %c0_i32_0 : i32, i32, i32
  }
  func.func @transform_2(%arg0: i32) -> (i32, i32) {
    %c0_i32 = arith.constant 0 : i32
    %c0_i32_0 = arith.constant 0 : i32
    %c0_i32_1 = arith.constant 0 : i32
    return %c0_i32, %c0_i32_0 : i32, i32
  }
  func.func @transform_3(%arg0: i32) -> (i32, i32) {
    %c0_i32 = arith.constant 0 : i32
    %c0_i32_0 = arith.constant 0 : i32
    %c0_i32_1 = arith.constant 0 : i32
    return %c0_i32, %c0_i32_0 : i32, i32
  }
  func.func @transform_4(%arg0: i32) -> (i32, i32) {
    %c0_i32 = arith.constant 0 : i32
    %c0_i32_0 = arith.constant 0 : i32
    return %c0_i32, %arg0 : i32, i32
  }
}

</mosaic_0001>

<llo_original>
// kernel: tpu_custom_call.1
$region0: #{tpu_custom_call.1}
  #allocation0 [shape = 'u32[]', space=smem, size = 0x4, offset = 0x4, fixed_abs, tag = 'smem constant byte address 0x4 - core index']
  #allocation1 [shape = 'u32[144,128]{1,0:T(1,128)}', space=vmem, size = 0x12000, scoped, tag = 'internal scratch']
  #allocation2 [shape = 'f32[36,1536]{1,0:T(8,128)}', space=vmem, size = 0x3c000, scoped, tag = 'scratch operand']
  %s0 = inlined_call_operand.vmem [shape: f32[8,4,1], index: 0, kind: input, shape index: {}]
  %s1 = inlined_call_operand.hbm [shape: f32[8,4,512], index: 1, kind: input, shape index: {}]
  %s2 = inlined_call_operand.vmem [shape: bf16[8,36], index: 2, kind: input, shape index: {}]
  %s3 = inlined_call_operand.vmem [shape: f32[8,1], index: 3, kind: input, shape index: {}]
  %s4 = inlined_call_operand.hbm [shape: f32[8,3072], index: 4, kind: output, shape index: {}]
  %s5 = sld [smem:[#allocation0]]
  $region53: #{tpu_custom_call.1} parent=0
    _
  %s7 = ssub.s32 1, %s5
  %s8 = scalar_select 0, %s7, %s5
  $region1: #{tpu_custom_call.1} parent=0
    #allocation3 [shape = 'u8[65536]{0}', space=vmem, size = 0x10000, scoped, tag = 'input window, operand 1']
    #allocation4 [shape = 's32[2]{0}', space=sflag, size = 0x8, scoped, tag = 'scoped memory for tpu_custom_call.1']
    #allocation5 [shape = 's32[2]{0}', space=sflag, size = 0x8, scoped, tag = 'scoped memory for tpu_custom_call.1']
    #allocation6 [shape = 'u8[98304]{0}', space=vmem, size = 0x18000, scoped, tag = 'output window, operand 0']
    %9 = vsyncpa [#allocation4], 0
    %s10 = scalar_lea.sflag [#allocation4], 1
    %11 = vsyncpa %s10, 0
    %12 = vsyncpa [#allocation5], 0
    %s13 = scalar_lea.sflag [#allocation5], 1
    %14 = vsyncpa %s13, 0
    loop: start=0, step=1, limit=4
    $region2: #{tpu_custom_call.1} parent=1 // loop_pre_header
      _
    $region3: #{tpu_custom_call.1} parent=1 // loop_header
      %s16 = sphi 0, %s20
      %p17 = scmp.ge.s32.totalorder %s16, 4
      %s26 = sphi 0, %s28
      %s29 = sphi 0, %s26
      %s30 = sphi 0, %s29
      %s46 = sphi 0, %s30
      %s52 = sphi 0, %s54
      %s55 = sphi 0, %s52
      %s56 = sphi 0, %s55
      %s72 = sphi 0, %s56
      %s76 = sphi 0, %s76
      %s78 = sphi 0, %s76
      %s79 = sphi 0, %s78
      %s93 = sphi 0, %s79
      %s97 = sphi 0, %s97
      %s99 = sphi 0, %s97
      %s100 = sphi 0, %s99
      %s114 = sphi 0, %s100
      %s120 = sphi 0, %s122
      %s123 = sphi 0, %s120
      %s124 = sphi 0, %s123
      %s140 = sphi 0, %s124
    $region4: #{tpu_custom_call.1} parent=1 // loop_header_branch
      %19 = sbr.rel (%p17) target = $region8
    $region5: #{tpu_custom_call.1} parent=1 // loop_body
      %s21 = ssub.s32 %s16, 1
      %s22 = ssub.s32 %s16, 2
      %s23 = sadd.s32 %s16, 1
      %s24 = ssub.s32 %s16, %s23
      %p25 = scmp.eq.s32.totalorder %s24, 0
      %s27 = sadd.s32 %s26, 1
      %s28 = scalar_select %p25, %s26, %s27
      %p31 = pneg %p25
      %p32 = scmp.eq.s32.totalorder %s16, 1
      %p33 = por %p31, %p32
      %p34 = scmp.ne.s32.totalorder %s26, %s29
      %p35 = scmp.eq.s32.totalorder %s16, 0
      %p36 = por %p34, %p35
      %p37 = scmp.ne.s32.totalorder %s26, %s29
      %p38 = scmp.eq.s32.totalorder %s21, 1
      %p39 = por %p37, %p38
      %p40 = scmp.ne.s32.totalorder %s29, %s30
      %p41 = scmp.eq.s32.totalorder %s21, 0
      %p42 = por %p40, %p41
      %p43 = scmp.ne.s32.totalorder %s29, %s30
      %p44 = scmp.eq.s32.totalorder %s22, 1
      %p45 = por %p43, %p44
      %p47 = scmp.ne.s32.totalorder %s30, %s46
      %p48 = scmp.eq.s32.totalorder %s22, 0
      %p49 = por %p47, %p48
      %s50 = ssub.s32 %s16, %s23
      %p51 = scmp.eq.s32.totalorder %s50, 0
      %s53 = sadd.s32 %s52, 1
      %s54 = scalar_select %p51, %s52, %s53
      %p57 = pneg %p51
      %p58 = scmp.eq.s32.totalorder %s16, 1
      %p59 = por %p57, %p58
      %p60 = scmp.ne.s32.totalorder %s52, %s55
      %p61 = scmp.eq.s32.totalorder %s16, 0
      %p62 = por %p60, %p61
      %p63 = scmp.ne.s32.totalorder %s52, %s55
      %p64 = scmp.eq.s32.totalorder %s21, 1
      %p65 = por %p63, %p64
      %p66 = scmp.ne.s32.totalorder %s55, %s56
      %p67 = scmp.eq.s32.totalorder %s21, 0
      %p68 = por %p66, %p67
      %p69 = scmp.ne.s32.totalorder %s55, %s56
      %p70 = scmp.eq.s32.totalorder %s22, 1
      %p71 = por %p69, %p70
      %p73 = scmp.ne.s32.totalorder %s56, %s72
      %p74 = scmp.eq.s32.totalorder %s22, 0
      %p75 = por %p73, %p74
      %s77 = sadd.s32 %s76, 1
      %p80 = scmp.eq.s32.totalorder %s16, 1
      %p81 = scmp.ne.s32.totalorder %s76, %s78
      %p82 = scmp.eq.s32.totalorder %s16, 0
      %p83 = por %p81, %p82
      %p84 = scmp.ne.s32.totalorder %s76, %s78
      %p85 = scmp.eq.s32.totalorder %s21, 1
      %p86 = por %p84, %p85
      %p87 = scmp.ne.s32.totalorder %s78, %s79
      %p88 = scmp.eq.s32.totalorder %s21, 0
      %p89 = por %p87, %p88
      %p90 = scmp.ne.s32.totalorder %s78, %s79
      %p91 = scmp.eq.s32.totalorder %s22, 1
      %p92 = por %p90, %p91
      %p94 = scmp.ne.s32.totalorder %s79, %s93
      %p95 = scmp.eq.s32.totalorder %s22, 0
      %p96 = por %p94, %p95
      %s98 = sadd.s32 %s97, 1
      %p101 = scmp.eq.s32.totalorder %s16, 1
      %p102 = scmp.ne.s32.totalorder %s97, %s99
      %p103 = scmp.eq.s32.totalorder %s16, 0
      %p104 = por %p102, %p103
      %p105 = scmp.ne.s32.totalorder %s97, %s99
      %p106 = scmp.eq.s32.totalorder %s21, 1
      %p107 = por %p105, %p106
      %p108 = scmp.ne.s32.totalorder %s99, %s100
      %p109 = scmp.eq.s32.totalorder %s21, 0
      %p110 = por %p108, %p109
      %p111 = scmp.ne.s32.totalorder %s99, %s100
      %p112 = scmp.eq.s32.totalorder %s22, 1
      %p113 = por %p111, %p112
      %p115 = scmp.ne.s32.totalorder %s100, %s114
      %p116 = scmp.eq.s32.totalorder %s22, 0
      %p117 = por %p115, %p116
      %s118 = ssub.s32 %s16, %s23
      %p119 = scmp.eq.s32.totalorder %s118, 0
      %s121 = sadd.s32 %s120, 1
      %s122 = scalar_select %p119, %s120, %s121
      %p125 = pneg %p119
      %p126 = scmp.eq.s32.totalorder %s16, 1
      %p127 = por %p125, %p126
      %p128 = scmp.ne.s32.totalorder %s120, %s123
      %p129 = scmp.eq.s32.totalorder %s16, 0
      %p130 = por %p128, %p129
      %p131 = scmp.ne.s32.totalorder %s120, %s123
      %p132 = scmp.eq.s32.totalorder %s21, 1
      %p133 = por %p131, %p132
      %p134 = scmp.ne.s32.totalorder %s123, %s124
      %p135 = scmp.eq.s32.totalorder %s21, 0
      %p136 = por %p134, %p135
      %p137 = scmp.ne.s32.totalorder %s123, %s124
      %p138 = scmp.eq.s32.totalorder %s22, 1
      %p139 = por %p137, %p138
      %p141 = scmp.ne.s32.totalorder %s124, %s140
      %p142 = scmp.eq.s32.totalorder %s22, 0
      %p143 = por %p141, %p142
      %p144 = scmp.le.s32.totalorder 1, %s16
      %p145 = scmp.lt.s32.totalorder %s16, 3
      %p146 = pnand %p144, %p145
      %p147 = pneg %p146
      // Predicated region
      $region9: #{tpu_custom_call.1} parent=5 // pred_check
        _
      $region10: #{tpu_custom_call.1} parent=5 // pred_check_branch
        %149 = sbr.rel (%p146) target = $region12
      $region11: #{tpu_custom_call.1} parent=5 // pred_region
        %s150 = ssub.s32 %s16, 1
        // Predicated region
        $region13: #{tpu_custom_call.1} parent=11 // pred_check
          %p151 = pneg %p89
        $region14: #{tpu_custom_call.1} parent=11 // pred_check_branch
          %153 = sbr.rel (%p151) target = $region16
        $region15: #{tpu_custom_call.1} parent=11 // pred_region
          _
        $region16: #{tpu_custom_call.1} parent=11 // pred_fallthru
          _
        // Predicated region
        $region17: #{tpu_custom_call.1} parent=11 // pred_check
          %p154 = pneg %p110
        $region18: #{tpu_custom_call.1} parent=11 // pred_check_branch
          %156 = sbr.rel (%p154) target = $region20
        $region19: #{tpu_custom_call.1} parent=11 // pred_region
          _
        $region20: #{tpu_custom_call.1} parent=11 // pred_fallthru
          _
      $region12: #{tpu_custom_call.1} parent=5 // pred_fallthru
        _
      %p157 = scmp.lt.s32.totalorder %s16, 2
      // Predicated region
      $region21: #{tpu_custom_call.1} parent=5 // pred_check
        %p158 = pneg %p157
      $region22: #{tpu_custom_call.1} parent=5 // pred_check_branch
        %160 = sbr.rel (%p158) target = $region24
      $region23: #{tpu_custom_call.1} parent=5 // pred_region
        // Predicated region
        $region25: #{tpu_custom_call.1} parent=23 // pred_check
          %p161 = pneg %p36
        $region26: #{tpu_custom_call.1} parent=23 // pred_check_branch
          %163 = sbr.rel (%p161) target = $region28
        $region27: #{tpu_custom_call.1} parent=23 // pred_region
          %s164 = smul.u32 4, %s16
          %p165 = scmp.lt.s32.totalorder %s164, 7
          %s166 = scalar_select %p165, %s164, 7
          %s167 = smul.addr %s166, 4
          %s168 = scalar_lea.vmem %s0, %s167
          %s169 = smul.u32 4, %s16
        $region28: #{tpu_custom_call.1} parent=23 // pred_fallthru
          _
        // Predicated region
        $region29: #{tpu_custom_call.1} parent=23 // pred_check
          %p170 = pneg %p62
        $region30: #{tpu_custom_call.1} parent=23 // pred_check_branch
          %172 = sbr.rel (%p170) target = $region32
        $region31: #{tpu_custom_call.1} parent=23 // pred_region
          %s173 = sand.u32 %s52, 1
          %s174 = scalar_lea.sflag [#allocation4], %s173
          %s175 = sand.u32 %s52, 1
          %s176 = smul.addr %s175, 64
          %s177 = scalar_lea.vmem [#allocation3], %s176
          %s178 = smul.u32 4, %s16
          %s180 = ssub.s32 1024, 1024
          %181 = vsyncadd %s174, %s180
          %s182 = smul.addr %s178, 4
          %s183 = smul.addr %s182, 64
          %s184 = scalar_lea.hbm %s1, %s183
          %s185 = sshll.u32 %s177, 4
          %s186 = int_to_ptr.vmem [resolvable:$true] %s185
          %191 = dma.hbm_to_vmem [thread:$0]  %s184, 1024, %s186, %s174, 256, 256, 16
        $region32: #{tpu_custom_call.1} parent=23 // pred_fallthru
          _
      $region24: #{tpu_custom_call.1} parent=5 // pred_fallthru
        _
      %p192 = scmp.le.s32.totalorder 1, %s16
      %p193 = scmp.lt.s32.totalorder %s16, 3
      %p194 = pnand %p192, %p193
      %p195 = pneg %p194
      // Predicated region
      $region33: #{tpu_custom_call.1} parent=5 // pred_check
        _
      $region34: #{tpu_custom_call.1} parent=5 // pred_check_branch
        %197 = sbr.rel (%p194) target = $region36
      $region35: #{tpu_custom_call.1} parent=5 // pred_region
        %s198 = ssub.s32 %s16, 1
        %s199 = sand.u32 %s55, 1
        %s200 = scalar_lea.sflag [#allocation4], %s199
        %s201 = sand.u32 %s55, 1
        %s202 = smul.addr %s201, 64
        %s203 = scalar_lea.vmem [#allocation3], %s202
        // Predicated region
        $region37: #{tpu_custom_call.1} parent=35 // pred_check
          %p204 = pneg %p68
        $region38: #{tpu_custom_call.1} parent=35 // pred_check_branch
          %206 = sbr.rel (%p204) target = $region40
        $region39: #{tpu_custom_call.1} parent=35 // pred_region
          %207 = dma.done %s200, 1024
        $region40: #{tpu_custom_call.1} parent=35 // pred_fallthru
          _
        %s208 = smul.u32 4, %s21
        %p209 = scmp.lt.s32.totalorder %s208, 7
        %s210 = scalar_select %p209, %s208, 7
        %s211 = smul.addr %s210, 4
        %s212 = scalar_lea.vmem %s0, %s211
        %p213 = pneg %p42
        %p214 = pneg %p39
        %s215 = sand.u32 %s55, 1
        %s216 = scalar_lea.sflag [#allocation4], %s215
        %s217 = sand.u32 %s55, 1
        %s218 = smul.addr %s217, 64
        %s219 = scalar_lea.vmem [#allocation3], %s218
        %p220 = pneg %p68
        %p221 = pneg %p65
        %p222 = pneg %p89
        %p223 = pneg %p86
        %p224 = pneg %p110
        %p225 = pneg %p107
        %p226 = pneg %p136
        %p227 = pneg %p133
        %s228 = sand.u32 %s123, 1
        %s229 = scalar_lea.sflag [#allocation5], %s228
        %s230 = sand.u32 %s123, 1
        %s231 = smul.addr %s230, 96
        %s232 = scalar_lea.vmem [#allocation6], %s231
        %s233 = smul.u32 4, %s21
        %p234 = scmp.lt.s32.totalorder %s233, 7
        %s235 = scalar_select %p234, %s233, 7
        %s236 = smul.addr %s235, 4
        %s237 = scalar_lea.vmem %s0, %s236
        %s238 = smul.u32 4, %s21
        %s239 = smul.u32 4, %s21
        %s240 = smul.u32 12, %s21
        %v242 = vld [vmem:[%s203] sm:$0xff]
        %v243 = vld [vmem:[%s203 + $0x8] sm:$0xff]
        %v244 = vld [vmem:[%s203 + $0x10] sm:$0xff]
        %v245 = vld [vmem:[%s203 + $0x18] sm:$0xff]
        %v246 = vld [vmem:[%s203 + $0x20] sm:$0xff]
        %v247 = vld [vmem:[%s203 + $0x28] sm:$0xff]
        %v248 = vld [vmem:[%s203 + $0x30] sm:$0xff]
        %v249 = vld [vmem:[%s203 + $0x38] sm:$0xff]
        %v250 = vld [vmem:[%s237] sm:$0xf]
        %v251 = vld [vmem:[%s237 + $0x4] sm:$0xf]
        %v252 = vld [vmem:[%s237 + $0x8] sm:$0xf]
        %v253 = vld [vmem:[%s237 + $0xc] sm:$0xf]
        %255 = vset.pattern.permute.xlu0 0
        %256 = vperm.xlu0 %255, %v250
        %v257 = vpop.permute.xlu0 %256
        %259 = vset.pattern.permute.xlu0 0
        %260 = vperm.xlu0 %259, %v251
        %v261 = vpop.permute.xlu0 %260
        %263 = vset.pattern.permute.xlu0 0
        %264 = vperm.xlu0 %263, %v252
        %v265 = vpop.permute.xlu0 %264
        %267 = vset.pattern.permute.xlu0 0
        %268 = vperm.xlu0 %267, %v253
        %v269 = vpop.permute.xlu0 %268
        %v271 = vunpack.c.l.s4 839922192
        %v272 = vunpack.c.0.s8 %v271
        %v273 = vlaneseq
        %v274 = vshrl.u32 %v273, 7
        %v275 = vsub.s32 %v272, %v274
        %v276 = vrot.slane %v257, %v275
        %v278 = vunpack.c.l.s4 839922192
        %v279 = vunpack.c.0.s8 %v278
        %v280 = vlaneseq
        %v281 = vshrl.u32 %v280, 7
        %v282 = vsub.s32 %v279, %v281
        %v283 = vrot.slane %v261, %v282
        %v285 = vunpack.c.l.s4 839922192
        %v286 = vunpack.c.0.s8 %v285
        %v287 = vlaneseq
        %v288 = vshrl.u32 %v287, 7
        %v289 = vsub.s32 %v286, %v288
        %v290 = vrot.slane %v265, %v289
        %v292 = vunpack.c.l.s4 839922192
        %v293 = vunpack.c.0.s8 %v292
        %v294 = vlaneseq
        %v295 = vshrl.u32 %v294, 7
        %v296 = vsub.s32 %v293, %v295
        %v297 = vrot.slane %v269, %v296
        %v302 = vmul.f32 %v242, %v276
        %v303 = vmul.f32 %v243, %v276
        %v304 = vmul.f32 %v244, %v283
        %v305 = vmul.f32 %v245, %v283
        %v306 = vmul.f32 %v246, %v290
        %v307 = vmul.f32 %v247, %v290
        %v308 = vmul.f32 %v248, %v297
        %v309 = vmul.f32 %v249, %v297
        %v312 = vcombine.high %v302, %v302
        %314 = vst [vmem:[#allocation2] sm:$0xf] %v302
        %315 = vst [vmem:[#allocation2 + $0x8] sm:$0xf] %v312
        %316 = vst [vmem:[#allocation2 + $0x10] sm:$0xf] %v303
        %v317 = vcombine.low %v302, %v302
        %v318 = vcombine.low %v303, %v303
        %319 = vrot.lane.b32.xlu0 %v317, 127
        %v320 = vpop.permute.xlu0 %319
        %321 = vrot.lane.b32.xlu0 %v302, 127
        %v322 = vpop.permute.xlu0 %321
        %323 = vrot.lane.b32.xlu0 %v318, 127
        %v324 = vpop.permute.xlu0 %323
        %325 = vrot.lane.b32.xlu0 %v303, 127
        %v326 = vpop.permute.xlu0 %325
        %vm327 = vcmask 1039360
        %v328 = vsel %vm327, %v320, %v322
        %v329 = vsel %vm327, %v322, %v324
        %v330 = vsel %vm327, %v324, %v326
        %334 = vst [vmem:[#allocation2] sm:$0xf0] %v328
        %335 = vst [vmem:[#allocation2 + $0x8] sm:$0xf0] %v329
        %336 = vst [vmem:[#allocation2 + $0x10] sm:$0xf0] %v330
        %v337 = vcombine.high %v303, %v303
        %338 = vrot.lane.b32.xlu0 %v302, 126
        %v339 = vpop.permute.xlu0 %338
        %340 = vrot.lane.b32.xlu0 %v312, 126
        %v341 = vpop.permute.xlu0 %340
        %342 = vrot.lane.b32.xlu0 %v303, 126
        %v343 = vpop.permute.xlu0 %342
        %344 = vrot.lane.b32.xlu0 %v337, 126
        %v345 = vpop.permute.xlu0 %344
        %vm346 = vcmask 1031168
        %v347 = vsel %vm346, %v339, %v341
        %v348 = vsel %vm346, %v341, %v343
        %v349 = vsel %vm346, %v343, %v345
        %353 = vst [vmem:[#allocation2 + $0x60] sm:$0xf] %v347
        %354 = vst [vmem:[#allocation2 + $0x68] sm:$0xf] %v348
        %355 = vst [vmem:[#allocation2 + $0x70] sm:$0xf] %v349
        %356 = vrot.lane.b32.xlu0 %v317, 110
        %v357 = vpop.permute.xlu0 %356
        %358 = vrot.lane.b32.xlu0 %v302, 110
        %v359 = vpop.permute.xlu0 %358
        %360 = vrot.lane.b32.xlu0 %v318, 110
        %v361 = vpop.permute.xlu0 %360
        %362 = vrot.lane.b32.xlu0 %v303, 110
        %v363 = vpop.permute.xlu0 %362
        %vm364 = vcmask 900096
        %v365 = vsel %vm364, %v357, %v359
        %v366 = vsel %vm364, %v359, %v361
        %v367 = vsel %vm364, %v361, %v363
        %371 = vst [vmem:[#allocation2 + $0x60] sm:$0xf0] %v365
        %372 = vst [vmem:[#allocation2 + $0x68] sm:$0xf0] %v366
        %373 = vst [vmem:[#allocation2 + $0x70] sm:$0xf0] %v367
        %374 = vrot.lane.b32.xlu0 %v302, 109
        %v375 = vpop.permute.xlu0 %374
        %376 = vrot.lane.b32.xlu0 %v312, 109
        %v377 = vpop.permute.xlu0 %376
        %378 = vrot.lane.b32.xlu0 %v303, 109
        %v379 = vpop.permute.xlu0 %378
        %380 = vrot.lane.b32.xlu0 %v337, 109
        %v381 = vpop.permute.xlu0 %380
        %vm382 = vcmask 891904
        %v383 = vsel %vm382, %v375, %v377
        %v384 = vsel %vm382, %v377, %v379
        %v385 = vsel %vm382, %v379, %v381
        %389 = vst [vmem:[#allocation2 + $0xc0] sm:$0xf] %v383
        %390 = vst [vmem:[#allocation2 + $0xc8] sm:$0xf] %v384
        %391 = vst [vmem:[#allocation2 + $0xd0] sm:$0xf] %v385
        %392 = vrot.lane.b32.xlu0 %v317, 108
        %v393 = vpop.permute.xlu0 %392
        %394 = vrot.lane.b32.xlu0 %v302, 108
        %v395 = vpop.permute.xlu0 %394
        %396 = vrot.lane.b32.xlu0 %v318, 108
        %v397 = vpop.permute.xlu0 %396
        %398 = vrot.lane.b32.xlu0 %v303, 108
        %v399 = vpop.permute.xlu0 %398
        %vm400 = vcmask 883712
        %v401 = vsel %vm400, %v393, %v395
        %v402 = vsel %vm400, %v395, %v397
        %v403 = vsel %vm400, %v397, %v399
        %407 = vst [vmem:[#allocation2 + $0xc0] sm:$0xf0] %v401
        %408 = vst [vmem:[#allocation2 + $0xc8] sm:$0xf0] %v402
        %409 = vst [vmem:[#allocation2 + $0xd0] sm:$0xf0] %v403
        %410 = vrot.lane.b32.xlu0 %v302, 92
        %v411 = vpop.permute.xlu0 %410
        %412 = vrot.lane.b32.xlu0 %v312, 92
        %v413 = vpop.permute.xlu0 %412
        %414 = vrot.lane.b32.xlu0 %v303, 92
        %v415 = vpop.permute.xlu0 %414
        %416 = vrot.lane.b32.xlu0 %v337, 92
        %v417 = vpop.permute.xlu0 %416
        %vm418 = vcmask 752640
        %v419 = vsel %vm418, %v411, %v413
        %v420 = vsel %vm418, %v413, %v415
        %v421 = vsel %vm418, %v415, %v417
        %425 = vst [vmem:[#allocation2 + $0x120] sm:$0xf] %v419
        %426 = vst [vmem:[#allocation2 + $0x128] sm:$0xf] %v420
        %427 = vst [vmem:[#allocation2 + $0x130] sm:$0xf] %v421
        %428 = vrot.lane.b32.xlu0 %v317, 91
        %v429 = vpop.permute.xlu0 %428
        %430 = vrot.lane.b32.xlu0 %v302, 91
        %v431 = vpop.permute.xlu0 %430
        %432 = vrot.lane.b32.xlu0 %v318, 91
        %v433 = vpop.permute.xlu0 %432
        %434 = vrot.lane.b32.xlu0 %v303, 91
        %v435 = vpop.permute.xlu0 %434
        %vm436 = vcmask 744448
        %v437 = vsel %vm436, %v429, %v431
        %v438 = vsel %vm436, %v431, %v433
        %v439 = vsel %vm436, %v433, %v435
        %443 = vst [vmem:[#allocation2 + $0x120] sm:$0xf0] %v437
        %444 = vst [vmem:[#allocation2 + $0x128] sm:$0xf0] %v438
        %445 = vst [vmem:[#allocation2 + $0x130] sm:$0xf0] %v439
        %446 = vrot.lane.b32.xlu0 %v302, 90
        %v447 = vpop.permute.xlu0 %446
        %448 = vrot.lane.b32.xlu0 %v312, 90
        %v449 = vpop.permute.xlu0 %448
        %450 = vrot.lane.b32.xlu0 %v303, 90
        %v451 = vpop.permute.xlu0 %450
        %452 = vrot.lane.b32.xlu0 %v337, 90
        %v453 = vpop.permute.xlu0 %452
        %vm454 = vcmask 736256
        %v455 = vsel %vm454, %v447, %v449
        %v456 = vsel %vm454, %v449, %v451
        %v457 = vsel %vm454, %v451, %v453
        %461 = vst [vmem:[#allocation2 + $0x180] sm:$0xf] %v455
        %462 = vst [vmem:[#allocation2 + $0x188] sm:$0xf] %v456
        %463 = vst [vmem:[#allocation2 + $0x190] sm:$0xf] %v457
        %v466 = vcombine.high %v304, %v304
        %468 = vst [vmem:[#allocation2 + $0x18] sm:$0xf] %v304
        %469 = vst [vmem:[#allocation2 + $0x20] sm:$0xf] %v466
        %470 = vst [vmem:[#allocation2 + $0x28] sm:$0xf] %v305
        %v471 = vcombine.low %v304, %v304
        %v472 = vcombine.low %v305, %v305
        %473 = vrot.lane.b32.xlu0 %v471, 127
        %v474 = vpop.permute.xlu0 %473
        %475 = vrot.lane.b32.xlu0 %v304, 127
        %v476 = vpop.permute.xlu0 %475
        %477 = vrot.lane.b32.xlu0 %v472, 127
        %v478 = vpop.permute.xlu0 %477
        %479 = vrot.lane.b32.xlu0 %v305, 127
        %v480 = vpop.permute.xlu0 %479
        %v481 = vsel %vm327, %v474, %v476
        %v482 = vsel %vm327, %v476, %v478
        %v483 = vsel %vm327, %v478, %v480
        %487 = vst [vmem:[#allocation2 + $0x18] sm:$0xf0] %v481
        %488 = vst [vmem:[#allocation2 + $0x20] sm:$0xf0] %v482
        %489 = vst [vmem:[#allocation2 + $0x28] sm:$0xf0] %v483
        %v490 = vcombine.high %v305, %v305
        %491 = vrot.lane.b32.xlu0 %v304, 126
        %v492 = vpop.permute.xlu0 %491
        %493 = vrot.lane.b32.xlu0 %v466, 126
        %v494 = vpop.permute.xlu0 %493
        %495 = vrot.lane.b32.xlu0 %v305, 126
        %v496 = vpop.permute.xlu0 %495
        %497 = vrot.lane.b32.xlu0 %v490, 126
        %v498 = vpop.permute.xlu0 %497
        %v499 = vsel %vm346, %v492, %v494
        %v500 = vsel %vm346, %v494, %v496
        %v501 = vsel %vm346, %v496, %v498
        %505 = vst [vmem:[#allocation2 + $0x78] sm:$0xf] %v499
        %506 = vst [vmem:[#allocation2 + $0x80] sm:$0xf] %v500
        %507 = vst [vmem:[#allocation2 + $0x88] sm:$0xf] %v501
        %508 = vrot.lane.b32.xlu0 %v471, 110
        %v509 = vpop.permute.xlu0 %508
        %510 = vrot.lane.b32.xlu0 %v304, 110
        %v511 = vpop.permute.xlu0 %510
        %512 = vrot.lane.b32.xlu0 %v472, 110
        %v513 = vpop.permute.xlu0 %512
        %514 = vrot.lane.b32.xlu0 %v305, 110
        %v515 = vpop.permute.xlu0 %514
        %v516 = vsel %vm364, %v509, %v511
        %v517 = vsel %vm364, %v511, %v513
        %v518 = vsel %vm364, %v513, %v515
        %522 = vst [vmem:[#allocation2 + $0x78] sm:$0xf0] %v516
        %523 = vst [vmem:[#allocation2 + $0x80] sm:$0xf0] %v517
        %524 = vst [vmem:[#allocation2 + $0x88] sm:$0xf0] %v518
        %525 = vrot.lane.b32.xlu0 %v304, 109
        %v526 = vpop.permute.xlu0 %525
        %527 = vrot.lane.b32.xlu0 %v466, 109
        %v528 = vpop.permute.xlu0 %527
        %529 = vrot.lane.b32.xlu0 %v305, 109
        %v530 = vpop.permute.xlu0 %529
        %531 = vrot.lane.b32.xlu0 %v490, 109
        %v532 = vpop.permute.xlu0 %531
        %v533 = vsel %vm382, %v526, %v528
        %v534 = vsel %vm382, %v528, %v530
        %v535 = vsel %vm382, %v530, %v532
        %539 = vst [vmem:[#allocation2 + $0xd8] sm:$0xf] %v533
        %540 = vst [vmem:[#allocation2 + $0xe0] sm:$0xf] %v534
        %541 = vst [vmem:[#allocation2 + $0xe8] sm:$0xf] %v535
        %542 = vrot.lane.b32.xlu0 %v471, 108
        %v543 = vpop.permute.xlu0 %542
        %544 = vrot.lane.b32.xlu0 %v304, 108
        %v545 = vpop.permute.xlu0 %544
        %546 = vrot.lane.b32.xlu0 %v472, 108
        %v547 = vpop.permute.xlu0 %546
        %548 = vrot.lane.b32.xlu0 %v305, 108
        %v549 = vpop.permute.xlu0 %548
        %v550 = vsel %vm400, %v543, %v545
        %v551 = vsel %vm400, %v545, %v547
        %v552 = vsel %vm400, %v547, %v549
        %556 = vst [vmem:[#allocation2 + $0xd8] sm:$0xf0] %v550
        %557 = vst [vmem:[#allocation2 + $0xe0] sm:$0xf0] %v551
        %558 = vst [vmem:[#allocation2 + $0xe8] sm:$0xf0] %v552
        %559 = vrot.lane.b32.xlu0 %v304, 92
        %v560 = vpop.permute.xlu0 %559
        %561 = vrot.lane.b32.xlu0 %v466, 92
        %v562 = vpop.permute.xlu0 %561
        %563 = vrot.lane.b32.xlu0 %v305, 92
        %v564 = vpop.permute.xlu0 %563
        %565 = vrot.lane.b32.xlu0 %v490, 92
        %v566 = vpop.permute.xlu0 %565
        %v567 = vsel %vm418, %v560, %v562
        %v568 = vsel %vm418, %v562, %v564
        %v569 = vsel %vm418, %v564, %v566
        %573 = vst [vmem:[#allocation2 + $0x138] sm:$0xf] %v567
        %574 = vst [vmem:[#allocation2 + $0x140] sm:$0xf] %v568
        %575 = vst [vmem:[#allocation2 + $0x148] sm:$0xf] %v569
        %576 = vrot.lane.b32.xlu0 %v471, 91
        %v577 = vpop.permute.xlu0 %576
        %578 = vrot.lane.b32.xlu0 %v304, 91
        %v579 = vpop.permute.xlu0 %578
        %580 = vrot.lane.b32.xlu0 %v472, 91
        %v581 = vpop.permute.xlu0 %580
        %582 = vrot.lane.b32.xlu0 %v305, 91
        %v583 = vpop.permute.xlu0 %582
        %v584 = vsel %vm436, %v577, %v579
        %v585 = vsel %vm436, %v579, %v581
        %v586 = vsel %vm436, %v581, %v583
        %590 = vst [vmem:[#allocation2 + $0x138] sm:$0xf0] %v584
        %591 = vst [vmem:[#allocation2 + $0x140] sm:$0xf0] %v585
        %592 = vst [vmem:[#allocation2 + $0x148] sm:$0xf0] %v586
        %593 = vrot.lane.b32.xlu0 %v304, 90
        %v594 = vpop.permute.xlu0 %593
        %595 = vrot.lane.b32.xlu0 %v466, 90
        %v596 = vpop.permute.xlu0 %595
        %597 = vrot.lane.b32.xlu0 %v305, 90
        %v598 = vpop.permute.xlu0 %597
        %599 = vrot.lane.b32.xlu0 %v490, 90
        %v600 = vpop.permute.xlu0 %599
        %v601 = vsel %vm454, %v594, %v596
        %v602 = vsel %vm454, %v596, %v598
        %v603 = vsel %vm454, %v598, %v600
        %607 = vst [vmem:[#allocation2 + $0x198] sm:$0xf] %v601
        %608 = vst [vmem:[#allocation2 + $0x1a0] sm:$0xf] %v602
        %609 = vst [vmem:[#allocation2 + $0x1a8] sm:$0xf] %v603
        %v612 = vcombine.high %v306, %v306
        %614 = vst [vmem:[#allocation2 + $0x30] sm:$0xf] %v306
        %615 = vst [vmem:[#allocation2 + $0x38] sm:$0xf] %v612
        %616 = vst [vmem:[#allocation2 + $0x40] sm:$0xf] %v307
        %v617 = vcombine.low %v306, %v306
        %v618 = vcombine.low %v307, %v307
        %619 = vrot.lane.b32.xlu0 %v617, 127
        %v620 = vpop.permute.xlu0 %619
        %621 = vrot.lane.b32.xlu0 %v306, 127
        %v622 = vpop.permute.xlu0 %621
        %623 = vrot.lane.b32.xlu0 %v618, 127
        %v624 = vpop.permute.xlu0 %623
        %625 = vrot.lane.b32.xlu0 %v307, 127
        %v626 = vpop.permute.xlu0 %625
        %v627 = vsel %vm327, %v620, %v622
        %v628 = vsel %vm327, %v622, %v624
        %v629 = vsel %vm327, %v624, %v626
        %633 = vst [vmem:[#allocation2 + $0x30] sm:$0xf0] %v627
        %634 = vst [vmem:[#allocation2 + $0x38] sm:$0xf0] %v628
        %635 = vst [vmem:[#allocation2 + $0x40] sm:$0xf0] %v629
        %v636 = vcombine.high %v307, %v307
        %637 = vrot.lane.b32.xlu0 %v306, 126
        %v638 = vpop.permute.xlu0 %637
        %639 = vrot.lane.b32.xlu0 %v612, 126
        %v640 = vpop.permute.xlu0 %639
        %641 = vrot.lane.b32.xlu0 %v307, 126
        %v642 = vpop.permute.xlu0 %641
        %643 = vrot.lane.b32.xlu0 %v636, 126
        %v644 = vpop.permute.xlu0 %643
        %v645 = vsel %vm346, %v638, %v640
        %v646 = vsel %vm346, %v640, %v642
        %v647 = vsel %vm346, %v642, %v644
        %651 = vst [vmem:[#allocation2 + $0x90] sm:$0xf] %v645
        %652 = vst [vmem:[#allocation2 + $0x98] sm:$0xf] %v646
        %653 = vst [vmem:[#allocation2 + $0xa0] sm:$0xf] %v647
        %654 = vrot.lane.b32.xlu0 %v617, 110
        %v655 = vpop.permute.xlu0 %654
        %656 = vrot.lane.b32.xlu0 %v306, 110
        %v657 = vpop.permute.xlu0 %656
        %658 = vrot.lane.b32.xlu0 %v618, 110
        %v659 = vpop.permute.xlu0 %658
        %660 = vrot.lane.b32.xlu0 %v307, 110
        %v661 = vpop.permute.xlu0 %660
        %v662 = vsel %vm364, %v655, %v657
        %v663 = vsel %vm364, %v657, %v659
        %v664 = vsel %vm364, %v659, %v661
        %668 = vst [vmem:[#allocation2 + $0x90] sm:$0xf0] %v662
        %669 = vst [vmem:[#allocation2 + $0x98] sm:$0xf0] %v663
        %670 = vst [vmem:[#allocation2 + $0xa0] sm:$0xf0] %v664
        %671 = vrot.lane.b32.xlu0 %v306, 109
        %v672 = vpop.permute.xlu0 %671
        %673 = vrot.lane.b32.xlu0 %v612, 109
        %v674 = vpop.permute.xlu0 %673
        %675 = vrot.lane.b32.xlu0 %v307, 109
        %v676 = vpop.permute.xlu0 %675
        %677 = vrot.lane.b32.xlu0 %v636, 109
        %v678 = vpop.permute.xlu0 %677
        %v679 = vsel %vm382, %v672, %v674
        %v680 = vsel %vm382, %v674, %v676
        %v681 = vsel %vm382, %v676, %v678
        %685 = vst [vmem:[#allocation2 + $0xf0] sm:$0xf] %v679
        %686 = vst [vmem:[#allocation2 + $0xf8] sm:$0xf] %v680
        %687 = vst [vmem:[#allocation2 + $0x100] sm:$0xf] %v681
        %688 = vrot.lane.b32.xlu0 %v617, 108
        %v689 = vpop.permute.xlu0 %688
        %690 = vrot.lane.b32.xlu0 %v306, 108
        %v691 = vpop.permute.xlu0 %690
        %692 = vrot.lane.b32.xlu0 %v618, 108
        %v693 = vpop.permute.xlu0 %692
        %694 = vrot.lane.b32.xlu0 %v307, 108
        %v695 = vpop.permute.xlu0 %694
        %v696 = vsel %vm400, %v689, %v691
        %v697 = vsel %vm400, %v691, %v693
        %v698 = vsel %vm400, %v693, %v695
        %702 = vst [vmem:[#allocation2 + $0xf0] sm:$0xf0] %v696
        %703 = vst [vmem:[#allocation2 + $0xf8] sm:$0xf0] %v697
        %704 = vst [vmem:[#allocation2 + $0x100] sm:$0xf0] %v698
        %705 = vrot.lane.b32.xlu0 %v306, 92
        %v706 = vpop.permute.xlu0 %705
        %707 = vrot.lane.b32.xlu0 %v612, 92
        %v708 = vpop.permute.xlu0 %707
        %709 = vrot.lane.b32.xlu0 %v307, 92
        %v710 = vpop.permute.xlu0 %709
        %711 = vrot.lane.b32.xlu0 %v636, 92
        %v712 = vpop.permute.xlu0 %711
        %v713 = vsel %vm418, %v706, %v708
        %v714 = vsel %vm418, %v708, %v710
        %v715 = vsel %vm418, %v710, %v712
        %719 = vst [vmem:[#allocation2 + $0x150] sm:$0xf] %v713
        %720 = vst [vmem:[#allocation2 + $0x158] sm:$0xf] %v714
        %721 = vst [vmem:[#allocation2 + $0x160] sm:$0xf] %v715
        %722 = vrot.lane.b32.xlu0 %v617, 91
        %v723 = vpop.permute.xlu0 %722
        %724 = vrot.lane.b32.xlu0 %v306, 91
        %v725 = vpop.permute.xlu0 %724
        %726 = vrot.lane.b32.xlu0 %v618, 91
        %v727 = vpop.permute.xlu0 %726
        %728 = vrot.lane.b32.xlu0 %v307, 91
        %v729 = vpop.permute.xlu0 %728
        %v730 = vsel %vm436, %v723, %v725
        %v731 = vsel %vm436, %v725, %v727
        %v732 = vsel %vm436, %v727, %v729
        %736 = vst [vmem:[#allocation2 + $0x150] sm:$0xf0] %v730
        %737 = vst [vmem:[#allocation2 + $0x158] sm:$0xf0] %v731
        %738 = vst [vmem:[#allocation2 + $0x160] sm:$0xf0] %v732
        %739 = vrot.lane.b32.xlu0 %v306, 90
        %v740 = vpop.permute.xlu0 %739
        %741 = vrot.lane.b32.xlu0 %v612, 90
        %v742 = vpop.permute.xlu0 %741
        %743 = vrot.lane.b32.xlu0 %v307, 90
        %v744 = vpop.permute.xlu0 %743
        %745 = vrot.lane.b32.xlu0 %v636, 90
        %v746 = vpop.permute.xlu0 %745
        %v747 = vsel %vm454, %v740, %v742
        %v748 = vsel %vm454, %v742, %v744
        %v749 = vsel %vm454, %v744, %v746
        %753 = vst [vmem:[#allocation2 + $0x1b0] sm:$0xf] %v747
        %754 = vst [vmem:[#allocation2 + $0x1b8] sm:$0xf] %v748
        %755 = vst [vmem:[#allocation2 + $0x1c0] sm:$0xf] %v749
        %v758 = vcombine.high %v308, %v308
        %760 = vst [vmem:[#allocation2 + $0x48] sm:$0xf] %v308
        %761 = vst [vmem:[#allocation2 + $0x50] sm:$0xf] %v758
        %762 = vst [vmem:[#allocation2 + $0x58] sm:$0xf] %v309
        %v763 = vcombine.low %v308, %v308
        %v764 = vcombine.low %v309, %v309
        %765 = vrot.lane.b32.xlu0 %v763, 127
        %v766 = vpop.permute.xlu0 %765
        %767 = vrot.lane.b32.xlu0 %v308, 127
        %v768 = vpop.permute.xlu0 %767
        %769 = vrot.lane.b32.xlu0 %v764, 127
        %v770 = vpop.permute.xlu0 %769
        %771 = vrot.lane.b32.xlu0 %v309, 127
        %v772 = vpop.permute.xlu0 %771
        %v773 = vsel %vm327, %v766, %v768
        %v774 = vsel %vm327, %v768, %v770
        %v775 = vsel %vm327, %v770, %v772
        %779 = vst [vmem:[#allocation2 + $0x48] sm:$0xf0] %v773
        %780 = vst [vmem:[#allocation2 + $0x50] sm:$0xf0] %v774
        %781 = vst [vmem:[#allocation2 + $0x58] sm:$0xf0] %v775
        %v782 = vcombine.high %v309, %v309
        %783 = vrot.lane.b32.xlu0 %v308, 126
        %v784 = vpop.permute.xlu0 %783
        %785 = vrot.lane.b32.xlu0 %v758, 126
        %v786 = vpop.permute.xlu0 %785
        %787 = vrot.lane.b32.xlu0 %v309, 126
        %v788 = vpop.permute.xlu0 %787
        %789 = vrot.lane.b32.xlu0 %v782, 126
        %v790 = vpop.permute.xlu0 %789
        %v791 = vsel %vm346, %v784, %v786
        %v792 = vsel %vm346, %v786, %v788
        %v793 = vsel %vm346, %v788, %v790
        %797 = vst [vmem:[#allocation2 + $0xa8] sm:$0xf] %v791
        %798 = vst [vmem:[#allocation2 + $0xb0] sm:$0xf] %v792
        %799 = vst [vmem:[#allocation2 + $0xb8] sm:$0xf] %v793
        %800 = vrot.lane.b32.xlu0 %v763, 110
        %v801 = vpop.permute.xlu0 %800
        %802 = vrot.lane.b32.xlu0 %v308, 110
        %v803 = vpop.permute.xlu0 %802
        %804 = vrot.lane.b32.xlu0 %v764, 110
        %v805 = vpop.permute.xlu0 %804
        %806 = vrot.lane.b32.xlu0 %v309, 110
        %v807 = vpop.permute.xlu0 %806
        %v808 = vsel %vm364, %v801, %v803
        %v809 = vsel %vm364, %v803, %v805
        %v810 = vsel %vm364, %v805, %v807
        %814 = vst [vmem:[#allocation2 + $0xa8] sm:$0xf0] %v808
        %815 = vst [vmem:[#allocation2 + $0xb0] sm:$0xf0] %v809
        %816 = vst [vmem:[#allocation2 + $0xb8] sm:$0xf0] %v810
        %817 = vrot.lane.b32.xlu0 %v308, 109
        %v818 = vpop.permute.xlu0 %817
        %819 = vrot.lane.b32.xlu0 %v758, 109
        %v820 = vpop.permute.xlu0 %819
        %821 = vrot.lane.b32.xlu0 %v309, 109
        %v822 = vpop.permute.xlu0 %821
        %823 = vrot.lane.b32.xlu0 %v782, 109
        %v824 = vpop.permute.xlu0 %823
        %v825 = vsel %vm382, %v818, %v820
        %v826 = vsel %vm382, %v820, %v822
        %v827 = vsel %vm382, %v822, %v824
        %831 = vst [vmem:[#allocation2 + $0x108] sm:$0xf] %v825
        %832 = vst [vmem:[#allocation2 + $0x110] sm:$0xf] %v826
        %833 = vst [vmem:[#allocation2 + $0x118] sm:$0xf] %v827
        %834 = vrot.lane.b32.xlu0 %v763, 108
        %v835 = vpop.permute.xlu0 %834
        %836 = vrot.lane.b32.xlu0 %v308, 108
        %v837 = vpop.permute.xlu0 %836
        %838 = vrot.lane.b32.xlu0 %v764, 108
        %v839 = vpop.permute.xlu0 %838
        %840 = vrot.lane.b32.xlu0 %v309, 108
        %v841 = vpop.permute.xlu0 %840
        %v842 = vsel %vm400, %v835, %v837
        %v843 = vsel %vm400, %v837, %v839
        %v844 = vsel %vm400, %v839, %v841
        %848 = vst [vmem:[#allocation2 + $0x108] sm:$0xf0] %v842
        %849 = vst [vmem:[#allocation2 + $0x110] sm:$0xf0] %v843
        %850 = vst [vmem:[#allocation2 + $0x118] sm:$0xf0] %v844
        %851 = vrot.lane.b32.xlu0 %v308, 92
        %v852 = vpop.permute.xlu0 %851
        %853 = vrot.lane.b32.xlu0 %v758, 92
        %v854 = vpop.permute.xlu0 %853
        %855 = vrot.lane.b32.xlu0 %v309, 92
        %v856 = vpop.permute.xlu0 %855
        %857 = vrot.lane.b32.xlu0 %v782, 92
        %v858 = vpop.permute.xlu0 %857
        %v859 = vsel %vm418, %v852, %v854
        %v860 = vsel %vm418, %v854, %v856
        %v861 = vsel %vm418, %v856, %v858
        %865 = vst [vmem:[#allocation2 + $0x168] sm:$0xf] %v859
        %866 = vst [vmem:[#allocation2 + $0x170] sm:$0xf] %v860
        %867 = vst [vmem:[#allocation2 + $0x178] sm:$0xf] %v861
        %868 = vrot.lane.b32.xlu0 %v763, 91
        %v869 = vpop.permute.xlu0 %868
        %870 = vrot.lane.b32.xlu0 %v308, 91
        %v871 = vpop.permute.xlu0 %870
        %872 = vrot.lane.b32.xlu0 %v764, 91
        %v873 = vpop.permute.xlu0 %872
        %874 = vrot.lane.b32.xlu0 %v309, 91
        %v875 = vpop.permute.xlu0 %874
        %v876 = vsel %vm436, %v869, %v871
        %v877 = vsel %vm436, %v871, %v873
        %v878 = vsel %vm436, %v873, %v875
        %882 = vst [vmem:[#allocation2 + $0x168] sm:$0xf0] %v876
        %883 = vst [vmem:[#allocation2 + $0x170] sm:$0xf0] %v877
        %884 = vst [vmem:[#allocation2 + $0x178] sm:$0xf0] %v878
        %885 = vrot.lane.b32.xlu0 %v308, 90
        %v886 = vpop.permute.xlu0 %885
        %887 = vrot.lane.b32.xlu0 %v758, 90
        %v888 = vpop.permute.xlu0 %887
        %889 = vrot.lane.b32.xlu0 %v309, 90
        %v890 = vpop.permute.xlu0 %889
        %891 = vrot.lane.b32.xlu0 %v782, 90
        %v892 = vpop.permute.xlu0 %891
        %v893 = vsel %vm454, %v886, %v888
        %v894 = vsel %vm454, %v888, %v890
        %v895 = vsel %vm454, %v890, %v892
        %899 = vst [vmem:[#allocation2 + $0x1c8] sm:$0xf] %v893
        %900 = vst [vmem:[#allocation2 + $0x1d0] sm:$0xf] %v894
        %901 = vst [vmem:[#allocation2 + $0x1d8] sm:$0xf] %v895
        %v902 = vld [vmem:[%s2] sm:$0xf]
        %v903 = vld [vmem:[#allocation2] sm:$0xff]
        %v904 = vld [vmem:[#allocation2 + $0x8] sm:$0xff]
        %v905 = vld [vmem:[#allocation2 + $0x10] sm:$0xff]
        %v906 = vld [vmem:[#allocation2 + $0x18] sm:$0xff]
        %v907 = vld [vmem:[#allocation2 + $0x20] sm:$0xff]
        %v908 = vld [vmem:[#allocation2 + $0x28] sm:$0xff]
        %v909 = vld [vmem:[#allocation2 + $0x30] sm:$0xff]
        %v910 = vld [vmem:[#allocation2 + $0x38] sm:$0xff]
        %v911 = vld [vmem:[#allocation2 + $0x40] sm:$0xff]
        %v912 = vld [vmem:[#allocation2 + $0x48] sm:$0xff]
        %v913 = vld [vmem:[#allocation2 + $0x50] sm:$0xff]
        %v914 = vld [vmem:[#allocation2 + $0x58] sm:$0xff]
        %v915 = vld [vmem:[#allocation2 + $0x60] sm:$0xff]
        %v916 = vld [vmem:[#allocation2 + $0x68] sm:$0xff]
        %v917 = vld [vmem:[#allocation2 + $0x70] sm:$0xff]
        %v918 = vld [vmem:[#allocation2 + $0x78] sm:$0xff]
        %v919 = vld [vmem:[#allocation2 + $0x80] sm:$0xff]
        %v920 = vld [vmem:[#allocation2 + $0x88] sm:$0xff]
        %v921 = vld [vmem:[#allocation2 + $0x90] sm:$0xff]
        %v922 = vld [vmem:[#allocation2 + $0x98] sm:$0xff]
        %v923 = vld [vmem:[#allocation2 + $0xa0] sm:$0xff]
        %v924 = vld [vmem:[#allocation2 + $0xa8] sm:$0xff]
        %v925 = vld [vmem:[#allocation2 + $0xb0] sm:$0xff]
        %v926 = vld [vmem:[#allocation2 + $0xb8] sm:$0xff]
        %v927 = vld [vmem:[#allocation2 + $0xc0] sm:$0xff]
        %v928 = vld [vmem:[#allocation2 + $0xc8] sm:$0xff]
        %v929 = vld [vmem:[#allocation2 + $0xd0] sm:$0xff]
        %v930 = vld [vmem:[#allocation2 + $0xd8] sm:$0xff]
        %v931 = vld [vmem:[#allocation2 + $0xe0] sm:$0xff]
        %v932 = vld [vmem:[#allocation2 + $0xe8] sm:$0xff]
        %v933 = vld [vmem:[#allocation2 + $0xf0] sm:$0xff]
        %v934 = vld [vmem:[#allocation2 + $0xf8] sm:$0xff]
        %v935 = vld [vmem:[#allocation2 + $0x100] sm:$0xff]
        %v936 = vld [vmem:[#allocation2 + $0x108] sm:$0xff]
        %v937 = vld [vmem:[#allocation2 + $0x110] sm:$0xff]
        %v938 = vld [vmem:[#allocation2 + $0x118] sm:$0xff]
        %v939 = vld [vmem:[#allocation2 + $0x120] sm:$0xff]
        %v940 = vld [vmem:[#allocation2 + $0x128] sm:$0xff]
        %v941 = vld [vmem:[#allocation2 + $0x130] sm:$0xff]
        %v942 = vld [vmem:[#allocation2 + $0x138] sm:$0xff]
        %v943 = vld [vmem:[#allocation2 + $0x140] sm:$0xff]
        %v944 = vld [vmem:[#allocation2 + $0x148] sm:$0xff]
        %v945 = vld [vmem:[#allocation2 + $0x150] sm:$0xff]
        %v946 = vld [vmem:[#allocation2 + $0x158] sm:$0xff]
        %v947 = vld [vmem:[#allocation2 + $0x160] sm:$0xff]
        %v948 = vld [vmem:[#allocation2 + $0x168] sm:$0xff]
        %v949 = vld [vmem:[#allocation2 + $0x170] sm:$0xff]
        %v950 = vld [vmem:[#allocation2 + $0x178] sm:$0xff]
        %v951 = vld [vmem:[#allocation2 + $0x180] sm:$0xf]
        %v952 = vld [vmem:[#allocation2 + $0x188] sm:$0xf]
        %v953 = vld [vmem:[#allocation2 + $0x190] sm:$0xf]
        %v954 = vld [vmem:[#allocation2 + $0x198] sm:$0xf]
        %v955 = vld [vmem:[#allocation2 + $0x1a0] sm:$0xf]
        %v956 = vld [vmem:[#allocation2 + $0x1a8] sm:$0xf]
        %v957 = vld [vmem:[#allocation2 + $0x1b0] sm:$0xf]
        %v958 = vld [vmem:[#allocation2 + $0x1b8] sm:$0xf]
        %v959 = vld [vmem:[#allocation2 + $0x1c0] sm:$0xf]
        %v960 = vld [vmem:[#allocation2 + $0x1c8] sm:$0xf]
        %v961 = vld [vmem:[#allocation2 + $0x1d0] sm:$0xf]
        %v962 = vld [vmem:[#allocation2 + $0x1d8] sm:$0xf]
        %v963 = vpack.c.bf16 %v915, %v903
        %v964 = vpack.c.bf16 %v916, %v904
        %v965 = vpack.c.bf16 %v917, %v905
        %v966 = vpack.c.bf16 %v918, %v906
        %v967 = vpack.c.bf16 %v919, %v907
        %v968 = vpack.c.bf16 %v920, %v908
        %v969 = vpack.c.bf16 %v921, %v909
        %v970 = vpack.c.bf16 %v922, %v910
        %v971 = vpack.c.bf16 %v923, %v911
        %v972 = vpack.c.bf16 %v924, %v912
        %v973 = vpack.c.bf16 %v925, %v913
        %v974 = vpack.c.bf16 %v926, %v914
        %v975 = vpack.c.bf16 %v939, %v927
        %v976 = vpack.c.bf16 %v940, %v928
        %v977 = vpack.c.bf16 %v941, %v929
        %v978 = vpack.c.bf16 %v942, %v930
        %v979 = vpack.c.bf16 %v943, %v931
        %v980 = vpack.c.bf16 %v944, %v932
        %v981 = vpack.c.bf16 %v945, %v933
        %v982 = vpack.c.bf16 %v946, %v934
        %v983 = vpack.c.bf16 %v947, %v935
        %v984 = vpack.c.bf16 %v948, %v936
        %v985 = vpack.c.bf16 %v949, %v937
        %v986 = vpack.c.bf16 %v950, %v938
        %v987 = vpack.c.bf16 %v951, %v951
        %v988 = vpack.c.bf16 %v952, %v952
        %v989 = vpack.c.bf16 %v953, %v953
        %v990 = vpack.c.bf16 %v954, %v954
        %v991 = vpack.c.bf16 %v955, %v955
        %v992 = vpack.c.bf16 %v956, %v956
        %v993 = vpack.c.bf16 %v957, %v957
        %v994 = vpack.c.bf16 %v958, %v958
        %v995 = vpack.c.bf16 %v959, %v959
        %v996 = vpack.c.bf16 %v960, %v960
        %v997 = vpack.c.bf16 %v961, %v961
        %v998 = vpack.c.bf16 %v962, %v962
        %v999 = vld [vmem:[%s3] sm:$0xff]
        %1001 = vset.pattern.permute.xlu0 0
        %1002 = vperm.xlu0 %1001, %v999
        %v1003 = vpop.permute.xlu0 %1002
        %vm1005 = vcmask 293888
        %v1007 = vsel %vm1005, %v902, 0
        %vm1009 = vcmask 1041408
        %v1011 = vsel %vm1009, %v987, 0
        %v1014 = vsel %vm1009, %v988, 0
        %v1017 = vsel %vm1009, %v989, 0
        %v1020 = vsel %vm1009, %v990, 0
        %v1023 = vsel %vm1009, %v991, 0
        %v1026 = vsel %vm1009, %v992, 0
        %v1029 = vsel %vm1009, %v993, 0
        %v1032 = vsel %vm1009, %v994, 0
        %v1035 = vsel %vm1009, %v995, 0
        %v1038 = vsel %vm1009, %v996, 0
        %v1041 = vsel %vm1009, %v997, 0
        %v1044 = vsel %vm1009, %v998, 0
        %1046 = vmatprep.subr.bf16.mxu0 %v964
        %1047 = vmatpush1.bf16.msra.mxu0 %v963
        %1048 = vmatprep.subr.bf16.mxu0 %v976
        %1049 = vmatpush1.bf16.msra.mxu0 %v975
        %1050 = vmatprep.subr.bf16.mxu0 %v1014
        %1051 = vmatpush1.bf16.msra.mxu0 %v1011
        %1052 = vmatprep.subr.bf16.mxu0 0
        %1053 = vmatpush1.bf16.msra.mxu0 0
        %1054 = vmatprep.subr.bf16.mxu0 0
        %1055 = vmatpush1.bf16.msra.mxu0 0
        %1056 = vmatprep.subr.bf16.mxu0 0
        %1057 = vmatpush1.bf16.msra.mxu0 0
        %1058 = vmatprep.subr.bf16.mxu0 0
        %1059 = vmatpush1.bf16.msra.mxu0 0
        %1060 = vmatprep.subr.bf16.mxu0 0
        %1061 = vmatpush1.bf16.msra.mxu0 0
        %1062 = vmatprep.subr.bf16.mxu0 0
        %1063 = vmatpush1.bf16.msra.mxu0 0
        %1064 = vmatprep.subr.bf16.mxu0 0
        %1065 = vmatpush1.bf16.msra.mxu0 0
        %1066 = vmatprep.subr.bf16.mxu0 0
        %1067 = vmatpush1.bf16.msra.mxu0 0
        %1068 = vmatprep.subr.bf16.mxu0 0
        %1069 = vmatpush1.bf16.msra.mxu0 0
        %1070 = vmatprep.subr.bf16.mxu0 0
        %1071 = vmatpush1.bf16.msra.mxu0 0
        %1072 = vmatprep.subr.bf16.mxu0 0
        %1073 = vmatpush1.bf16.msra.mxu0 0
        %1074 = vmatprep.subr.bf16.mxu0 0
        %1075 = vmatpush1.bf16.msra.mxu0 0
        %1076 = vmatprep.subr.bf16.mxu0 0
        %1077 = vmatpush1.bf16.msra.mxu0 0
        %1078 = vmatprep.mubr.bf16.mxu0 0
        %1079 = vmatmul.mubr.bf16.gmra.mrb[0].mxu0 %v1007
        %v1080 = vpop.f32.mrb[0].mxu0
        %v1081 = vadd.f32 %v1003, %v1080
        %v1082 = vpop.f32.mrb[0].mxu0
        %v1083 = vadd.f32 %v1003, %v1082
        %v1084 = vpop.f32.mrb[0].mxu0
        %v1085 = vpop.f32.mrb[0].mxu0
        %1086 = vdwg.mxu0
        %1087 = vmatprep.subr.bf16.mxu0 %v966
        %1088 = vmatpush1.bf16.msra.mxu0 %v965
        %1089 = vmatprep.subr.bf16.mxu0 %v978
        %1090 = vmatpush1.bf16.msra.mxu0 %v977
        %1091 = vmatprep.subr.bf16.mxu0 %v1020
        %1092 = vmatpush1.bf16.msra.mxu0 %v1017
        %1093 = vmatprep.subr.bf16.mxu0 0
        %1094 = vmatpush1.bf16.msra.mxu0 0
        %1095 = vmatprep.subr.bf16.mxu0 0
        %1096 = vmatpush1.bf16.msra.mxu0 0
        %1097 = vmatprep.subr.bf16.mxu0 0
        %1098 = vmatpush1.bf16.msra.mxu0 0
        %1099 = vmatprep.subr.bf16.mxu0 0
        %1100 = vmatpush1.bf16.msra.mxu0 0
        %1101 = vmatprep.subr.bf16.mxu0 0
        %1102 = vmatpush1.bf16.msra.mxu0 0
        %1103 = vmatprep.subr.bf16.mxu0 0
        %1104 = vmatpush1.bf16.msra.mxu0 0
        %1105 = vmatprep.subr.bf16.mxu0 0
        %1106 = vmatpush1.bf16.msra.mxu0 0
        %1107 = vmatprep.subr.bf16.mxu0 0
        %1108 = vmatpush1.bf16.msra.mxu0 0
        %1109 = vmatprep.subr.bf16.mxu0 0
        %1110 = vmatpush1.bf16.msra.mxu0 0
        %1111 = vmatprep.subr.bf16.mxu0 0
        %1112 = vmatpush1.bf16.msra.mxu0 0
        %1113 = vmatprep.subr.bf16.mxu0 0
        %1114 = vmatpush1.bf16.msra.mxu0 0
        %1115 = vmatprep.subr.bf16.mxu0 0
        %1116 = vmatpush1.bf16.msra.mxu0 0
        %1117 = vmatprep.subr.bf16.mxu0 0
        %1118 = vmatpush1.bf16.msra.mxu0 0
        %1119 = vmatprep.mubr.bf16.mxu0 0
        %1120 = vmatmul.mubr.bf16.gmra.mrb[0].mxu0 %v1007
        %v1121 = vpop.f32.mrb[0].mxu0
        %v1122 = vadd.f32 %v1003, %v1121
        %v1123 = vpop.f32.mrb[0].mxu0
        %v1124 = vadd.f32 %v1003, %v1123
        %v1125 = vpop.f32.mrb[0].mxu0
        %v1126 = vpop.f32.mrb[0].mxu0
        %1127 = vdwg.mxu0
        %1128 = vmatprep.subr.bf16.mxu0 %v968
        %1129 = vmatpush1.bf16.msra.mxu0 %v967
        %1130 = vmatprep.subr.bf16.mxu0 %v980
        %1131 = vmatpush1.bf16.msra.mxu0 %v979
        %1132 = vmatprep.subr.bf16.mxu0 %v1026
        %1133 = vmatpush1.bf16.msra.mxu0 %v1023
        %1134 = vmatprep.subr.bf16.mxu0 0
        %1135 = vmatpush1.bf16.msra.mxu0 0
        %1136 = vmatprep.subr.bf16.mxu0 0
        %1137 = vmatpush1.bf16.msra.mxu0 0
        %1138 = vmatprep.subr.bf16.mxu0 0
        %1139 = vmatpush1.bf16.msra.mxu0 0
        %1140 = vmatprep.subr.bf16.mxu0 0
        %1141 = vmatpush1.bf16.msra.mxu0 0
        %1142 = vmatprep.subr.bf16.mxu0 0
        %1143 = vmatpush1.bf16.msra.mxu0 0
        %1144 = vmatprep.subr.bf16.mxu0 0
        %1145 = vmatpush1.bf16.msra.mxu0 0
        %1146 = vmatprep.subr.bf16.mxu0 0
        %1147 = vmatpush1.bf16.msra.mxu0 0
        %1148 = vmatprep.subr.bf16.mxu0 0
        %1149 = vmatpush1.bf16.msra.mxu0 0
        %1150 = vmatprep.subr.bf16.mxu0 0
        %1151 = vmatpush1.bf16.msra.mxu0 0
        %1152 = vmatprep.subr.bf16.mxu0 0
        %1153 = vmatpush1.bf16.msra.mxu0 0
        %1154 = vmatprep.subr.bf16.mxu0 0
        %1155 = vmatpush1.bf16.msra.mxu0 0
        %1156 = vmatprep.subr.bf16.mxu0 0
        %1157 = vmatpush1.bf16.msra.mxu0 0
        %1158 = vmatprep.subr.bf16.mxu0 0
        %1159 = vmatpush1.bf16.msra.mxu0 0
        %1160 = vmatprep.mubr.bf16.mxu0 0
        %1161 = vmatmul.mubr.bf16.gmra.mrb[0].mxu0 %v1007
        %v1162 = vpop.f32.mrb[0].mxu0
        %v1163 = vadd.f32 %v1003, %v1162
        %v1164 = vpop.f32.mrb[0].mxu0
        %v1165 = vadd.f32 %v1003, %v1164
        %v1166 = vpop.f32.mrb[0].mxu0
        %v1167 = vpop.f32.mrb[0].mxu0
        %1168 = vdwg.mxu0
        %1169 = vmatprep.subr.bf16.mxu0 %v970
        %1170 = vmatpush1.bf16.msra.mxu0 %v969
        %1171 = vmatprep.subr.bf16.mxu0 %v982
        %1172 = vmatpush1.bf16.msra.mxu0 %v981
        %1173 = vmatprep.subr.bf16.mxu0 %v1032
        %1174 = vmatpush1.bf16.msra.mxu0 %v1029
        %1175 = vmatprep.subr.bf16.mxu0 0
        %1176 = vmatpush1.bf16.msra.mxu0 0
        %1177 = vmatprep.subr.bf16.mxu0 0
        %1178 = vmatpush1.bf16.msra.mxu0 0
        %1179 = vmatprep.subr.bf16.mxu0 0
        %1180 = vmatpush1.bf16.msra.mxu0 0
        %1181 = vmatprep.subr.bf16.mxu0 0
        %1182 = vmatpush1.bf16.msra.mxu0 0
        %1183 = vmatprep.subr.bf16.mxu0 0
        %1184 = vmatpush1.bf16.msra.mxu0 0
        %1185 = vmatprep.subr.bf16.mxu0 0
        %1186 = vmatpush1.bf16.msra.mxu0 0
        %1187 = vmatprep.subr.bf16.mxu0 0
        %1188 = vmatpush1.bf16.msra.mxu0 0
        %1189 = vmatprep.subr.bf16.mxu0 0
        %1190 = vmatpush1.bf16.msra.mxu0 0
        %1191 = vmatprep.subr.bf16.mxu0 0
        %1192 = vmatpush1.bf16.msra.mxu0 0
        %1193 = vmatprep.subr.bf16.mxu0 0
        %1194 = vmatpush1.bf16.msra.mxu0 0
        %1195 = vmatprep.subr.bf16.mxu0 0
        %1196 = vmatpush1.bf16.msra.mxu0 0
        %1197 = vmatprep.subr.bf16.mxu0 0
        %1198 = vmatpush1.bf16.msra.mxu0 0
        %1199 = vmatprep.subr.bf16.mxu0 0
        %1200 = vmatpush1.bf16.msra.mxu0 0
        %1201 = vmatprep.mubr.bf16.mxu0 0
        %1202 = vmatmul.mubr.bf16.gmra.mrb[0].mxu0 %v1007
        %v1203 = vpop.f32.mrb[0].mxu0
        %v1204 = vadd.f32 %v1003, %v1203
        %v1205 = vpop.f32.mrb[0].mxu0
        %v1206 = vadd.f32 %v1003, %v1205
        %v1207 = vpop.f32.mrb[0].mxu0
        %v1208 = vpop.f32.mrb[0].mxu0
        %1209 = vdwg.mxu0
        %1210 = vmatprep.subr.bf16.mxu0 %v972
        %1211 = vmatpush1.bf16.msra.mxu0 %v971
        %1212 = vmatprep.subr.bf16.mxu0 %v984
        %1213 = vmatpush1.bf16.msra.mxu0 %v983
        %1214 = vmatprep.subr.bf16.mxu0 %v1038
        %1215 = vmatpush1.bf16.msra.mxu0 %v1035
        %1216 = vmatprep.subr.bf16.mxu0 0
        %1217 = vmatpush1.bf16.msra.mxu0 0
        %1218 = vmatprep.subr.bf16.mxu0 0
        %1219 = vmatpush1.bf16.msra.mxu0 0
        %1220 = vmatprep.subr.bf16.mxu0 0
        %1221 = vmatpush1.bf16.msra.mxu0 0
        %1222 = vmatprep.subr.bf16.mxu0 0
        %1223 = vmatpush1.bf16.msra.mxu0 0
        %1224 = vmatprep.subr.bf16.mxu0 0
        %1225 = vmatpush1.bf16.msra.mxu0 0
        %1226 = vmatprep.subr.bf16.mxu0 0
        %1227 = vmatpush1.bf16.msra.mxu0 0
        %1228 = vmatprep.subr.bf16.mxu0 0
        %1229 = vmatpush1.bf16.msra.mxu0 0
        %1230 = vmatprep.subr.bf16.mxu0 0
        %1231 = vmatpush1.bf16.msra.mxu0 0
        %1232 = vmatprep.subr.bf16.mxu0 0
        %1233 = vmatpush1.bf16.msra.mxu0 0
        %1234 = vmatprep.subr.bf16.mxu0 0
        %1235 = vmatpush1.bf16.msra.mxu0 0
        %1236 = vmatprep.subr.bf16.mxu0 0
        %1237 = vmatpush1.bf16.msra.mxu0 0
        %1238 = vmatprep.subr.bf16.mxu0 0
        %1239 = vmatpush1.bf16.msra.mxu0 0
        %1240 = vmatprep.subr.bf16.mxu0 0
        %1241 = vmatpush1.bf16.msra.mxu0 0
        %1242 = vmatprep.mubr.bf16.mxu0 0
        %1243 = vmatmul.mubr.bf16.gmra.mrb[0].mxu0 %v1007
        %v1244 = vpop.f32.mrb[0].mxu0
        %v1245 = vadd.f32 %v1003, %v1244
        %v1246 = vpop.f32.mrb[0].mxu0
        %v1247 = vadd.f32 %v1003, %v1246
        %v1248 = vpop.f32.mrb[0].mxu0
        %v1249 = vpop.f32.mrb[0].mxu0
        %1250 = vdwg.mxu0
        %1251 = vmatprep.subr.bf16.mxu0 %v974
        %1252 = vmatpush1.bf16.msra.mxu0 %v973
        %1253 = vmatprep.subr.bf16.mxu0 %v986
        %1254 = vmatpush1.bf16.msra.mxu0 %v985
        %1255 = vmatprep.subr.bf16.mxu0 %v1044
        %1256 = vmatpush1.bf16.msra.mxu0 %v1041
        %1257 = vmatprep.subr.bf16.mxu0 0
        %1258 = vmatpush1.bf16.msra.mxu0 0
        %1259 = vmatprep.subr.bf16.mxu0 0
        %1260 = vmatpush1.bf16.msra.mxu0 0
        %1261 = vmatprep.subr.bf16.mxu0 0
        %1262 = vmatpush1.bf16.msra.mxu0 0
        %1263 = vmatprep.subr.bf16.mxu0 0
        %1264 = vmatpush1.bf16.msra.mxu0 0
        %1265 = vmatprep.subr.bf16.mxu0 0
        %1266 = vmatpush1.bf16.msra.mxu0 0
        %1267 = vmatprep.subr.bf16.mxu0 0
        %1268 = vmatpush1.bf16.msra.mxu0 0
        %1269 = vmatprep.subr.bf16.mxu0 0
        %1270 = vmatpush1.bf16.msra.mxu0 0
        %1271 = vmatprep.subr.bf16.mxu0 0
        %1272 = vmatpush1.bf16.msra.mxu0 0
        %1273 = vmatprep.subr.bf16.mxu0 0
        %1274 = vmatpush1.bf16.msra.mxu0 0
        %1275 = vmatprep.subr.bf16.mxu0 0
        %1276 = vmatpush1.bf16.msra.mxu0 0
        %1277 = vmatprep.subr.bf16.mxu0 0
        %1278 = vmatpush1.bf16.msra.mxu0 0
        %1279 = vmatprep.subr.bf16.mxu0 0
        %1280 = vmatpush1.bf16.msra.mxu0 0
        %1281 = vmatprep.subr.bf16.mxu0 0
        %1282 = vmatpush1.bf16.msra.mxu0 0
        %1283 = vmatprep.mubr.bf16.mxu0 0
        %1284 = vmatmul.mubr.bf16.gmra.mrb[0].mxu0 %v1007
        %v1285 = vpop.f32.mrb[0].mxu0
        %v1286 = vadd.f32 %v1003, %v1285
        %v1287 = vpop.f32.mrb[0].mxu0
        %v1288 = vadd.f32 %v1003, %v1287
        %v1289 = vpop.f32.mrb[0].mxu0
        %v1290 = vpop.f32.mrb[0].mxu0
        %1291 = vdwg.mxu0
        %1292 = vst [vmem:[%s232] sm:$0xff] %v1081
        %1293 = vst [vmem:[%s232 + $0x8] sm:$0xff] %v1083
        %1294 = vst [vmem:[%s232 + $0x10] sm:$0xff] %v1122
        %1295 = vst [vmem:[%s232 + $0x18] sm:$0xff] %v1124
        %1296 = vst [vmem:[%s232 + $0x20] sm:$0xff] %v1163
        %1297 = vst [vmem:[%s232 + $0x28] sm:$0xff] %v1165
        %1298 = vst [vmem:[%s232 + $0x30] sm:$0xff] %v1204
        %1299 = vst [vmem:[%s232 + $0x38] sm:$0xff] %v1206
        %1300 = vst [vmem:[%s232 + $0x40] sm:$0xff] %v1245
        %1301 = vst [vmem:[%s232 + $0x48] sm:$0xff] %v1247
        %1302 = vst [vmem:[%s232 + $0x50] sm:$0xff] %v1286
        %1303 = vst [vmem:[%s232 + $0x58] sm:$0xff] %v1288
        %s1304 = sand.u32 %s123, 1
        %s1305 = scalar_lea.sflag [#allocation5], %s1304
        %s1306 = sand.u32 %s123, 1
        %s1307 = smul.addr %s1306, 96
        %s1308 = scalar_lea.vmem [#allocation6], %s1307
        // Predicated region
        $region41: #{tpu_custom_call.1} parent=35 // pred_check
          %p1309 = pneg %p133
        $region42: #{tpu_custom_call.1} parent=35 // pred_check_branch
          %1311 = sbr.rel (%p1309) target = $region44
        $region43: #{tpu_custom_call.1} parent=35 // pred_region
          %s1312 = smul.u32 12, %s21
          %s1314 = ssub.s32 1536, 1536
          %1315 = vsyncadd %s1305, %s1314
          %s1316 = smul.addr %s1312, 128
          %s1317 = scalar_lea.hbm %s4, %s1316
          %s1319 = sshll.u32 %s1308, 4
          %s1320 = int_to_ptr.vmem [resolvable:$true] %s1319
          %1322 = dma.vmem_to_hbm [thread:$0]  %s1320, 1536, %s1317, %s1305
        $region44: #{tpu_custom_call.1} parent=35 // pred_fallthru
          _
      $region36: #{tpu_custom_call.1} parent=5 // pred_fallthru
        _
      %p1323 = scmp.le.s32.totalorder 2, %s16
      // Predicated region
      $region45: #{tpu_custom_call.1} parent=5 // pred_check
        %p1324 = pneg %p1323
      $region46: #{tpu_custom_call.1} parent=5 // pred_check_branch
        %1326 = sbr.rel (%p1324) target = $region48
      $region47: #{tpu_custom_call.1} parent=5 // pred_region
        %s1327 = ssub.s32 %s16, 2
        // Predicated region
        $region49: #{tpu_custom_call.1} parent=47 // pred_check
          %p1328 = pneg %p139
        $region50: #{tpu_custom_call.1} parent=47 // pred_check_branch
          %1330 = sbr.rel (%p1328) target = $region52
        $region51: #{tpu_custom_call.1} parent=47 // pred_region
          %s1331 = sand.u32 %s124, 1
          %s1332 = scalar_lea.sflag [#allocation5], %s1331
          %s1333 = sand.u32 %s124, 1
          %s1334 = smul.addr %s1333, 96
          %s1335 = scalar_lea.vmem [#allocation6], %s1334
          %1336 = dma.done %s1332, 1536
        $region52: #{tpu_custom_call.1} parent=47 // pred_fallthru
          _
      $region48: #{tpu_custom_call.1} parent=5 // pred_fallthru
        _
    $region6: #{tpu_custom_call.1} parent=1 // loop_footer
      %s20 = sadd.s32 1, %s16
    $region7: #{tpu_custom_call.1} parent=1 // loop_footer_branch
      %15 = sbr.rel target = $region3
    $region8: #{tpu_custom_call.1} parent=1 // loop_exit
      _
    %1337 = vsyncpa [#allocation4], 1
    %s1338 = scalar_lea.sflag [#allocation4], 1
    %1339 = vsyncpa %s1338, 1
    %1340 = vsyncpa [#allocation5], 1
    %s1341 = scalar_lea.sflag [#allocation5], 1
    %1342 = vsyncpa %s1341, 1

</llo_original>
